<compile_context>
chip_gen: v7x
topology: tpu7x:2x2x1
jax: 0.10.0
libtpu: 0.0.40
codegen_flags: <defaults>
</compile_context>

<pallas_src>
import math

import jax
import jax.numpy as jnp
from jax.experimental import pallas as pl
from jax.experimental.pallas import tpu as pltpu


def _pick_lane_tile(L, bytes_per_lane_col, *, vmem_budget=12 * 1024 * 1024,
                    max_tile=2048, min_blocks=1):
    """Pick a lane tile T for a length-L lane axis.

    Returns (T, exact) with exact == (L % T == 0).  T is always a multiple of 128 or the
    full extent L (both legal trailing block dims), always respects the VMEM budget
    (bytes_per_lane_col covers the double-buffered I/O blocks AND in-kernel temporaries
    per lane column), and prefers T >= 512 (~85% of HBM roofline vs ~29% at 128)."""
    cap = vmem_budget // max(1, bytes_per_lane_col)
    cap = min(cap, max_tile)
    cap = max(128, (cap // 128) * 128)
    if min_blocks > 1:
        # Keep at least `min_blocks` grid steps so both v7x TensorCores get work.
        cap = min(cap, max(128, ((L // min_blocks) // 128) * 128))
    if L <= cap:
        return L, True                                   # full extent, fits the budget
    # Largest 128-multiple exact divisor of L under the cap (no masked tail needed).
    best_div = 0
    t = cap
    while t >= 128:
        if L % t == 0:
            best_div = t
            break
        t -= 128
    if best_div >= min(512, cap):
        return best_div, True
    # No decent exact divisor: budget-sized tile with a masked tail block.
    T = min(cap, ((L + 127) // 128) * 128)
    T = max(128, (T // 128) * 128)
    if best_div >= T // 2:                               # near-as-good exact divisor
        return best_div, True
    return T, (L % T == 0)


def _fused_kernel(x_ref, w_ref, scale_ref, shift_ref, sel_ref, o_ref):
    # x_ref:   (1, Cin, T)   2x2-upsampled x, lane axis == final flattened (2H, 2W) axis
    # w_ref:   (KH, KW, Cout, Cin)
    # scale/shift: (Cout, 1) folded BatchNorm affine
    # sel_ref: (1, T) int32 lane selector = 2*kh + kw for each output lane
    # o_ref:   (1, Cout, T)  final-layout output tile
    x = x_ref[0]                                   # (Cin, T), lane-dense
    sel = sel_ref[...]                             # (1, T)
    sc = scale_ref[...]                            # (Cout, 1)
    sh = shift_ref[...]
    y00 = jnp.dot(w_ref[0, 0], x, preferred_element_type=jnp.float32)
    y01 = jnp.dot(w_ref[0, 1], x, preferred_element_type=jnp.float32)
    y10 = jnp.dot(w_ref[1, 0], x, preferred_element_type=jnp.float32)
    y11 = jnp.dot(w_ref[1, 1], x, preferred_element_type=jnp.float32)
    y = jnp.where(sel == 0, y00,
        jnp.where(sel == 1, y01,
        jnp.where(sel == 2, y10, y11)))            # (kh, kw) interleave on the VPU
    o_ref[0] = jnp.maximum(y * sc + sh, 0.0).astype(o_ref.dtype)


def trans_conv_bn_relu(x_nchw, weight, gamma, beta, *, eps=1e-5):
    """x_nchw: (N, Cin, H, W); weight: (Cin, Cout, 2, 2) in ConvTranspose2d layout."""
    N, Cin, H, W = x_nchw.shape
    Cin_w, Cout, KH, KW = weight.shape
    assert Cin_w == Cin and (KH, KW) == (2, 2)

    xf = x_nchw.astype(jnp.float32)
    wf = weight.astype(jnp.float32)

    # ---- analytic BatchNorm(training, biased var) stats: centered two-pass over x only ----
    # y[n,o,2h+kh,2w+kw] = sum_c W[c,o,kh,kw] x[n,c,h,w].  With x = xc + mu (per-channel mean):
    #   mean_o = mean_{kh,kw} m[o,kh,kw]                       , m[o,kh,kw] = sum_c mu_c W[c,o,kh,kw]
    #   var_o  = mean_{kh,kw} (w_khkw^T Gc w_khkw) / (N*H*W)  +  mean_{kh,kw} (m - mean_o)^2
    # with Gc the centered Gram of x; centering avoids the E[y^2]-E[y]^2 cancellation.
    mu = jnp.mean(xf, axis=(0, 2, 3))                              # (Cin,)
    xc = xf - mu[None, :, None, None]
    Gc = jnp.einsum("nchw,ndhw->cd", xc, xc)                       # (Cin, Cin)
    q = jnp.einsum("cokl,cd,dokl->okl", wf, Gc, wf)                # (Cout, KH, KW)
    m = jnp.einsum("c,cokl->okl", mu, wf)                          # (Cout, KH, KW)
    mean = jnp.mean(m, axis=(1, 2))                                # (Cout,)
    var = (jnp.mean(q, axis=(1, 2)) / jnp.float32(N * H * W)
           + jnp.mean((m - mean[:, None, None]) ** 2, axis=(1, 2)))
    scale_vec = gamma.astype(jnp.float32) / jnp.sqrt(var + eps)
    shift_vec = beta.astype(jnp.float32) - mean * scale_vec
    scale = scale_vec.reshape(Cout, 1)
    shift = shift_vec.reshape(Cout, 1)

    # ---- operands for the fused kernel ----
    Hout, Wout = KH * H, KW * W
    Lout = Hout * Wout
    # x upsampled 2x2 (nearest) and flattened: x_exp[n, c, (2h+kh)*Wout + 2w+kw] = x[n, c, h, w].
    x_exp = jnp.repeat(jnp.repeat(xf, KH, axis=2), KW, axis=3).reshape(N, Cin, Lout)
    wt = jnp.transpose(wf, (2, 3, 1, 0))                           # (KH, KW, Cout, Cin)
    pos = jnp.arange(Lout, dtype=jnp.int32)
    sel = (2 * ((pos // Wout) % 2) + (pos % 2)).reshape(1, Lout)   # 2*kh + kw per output lane

    # VMEM bytes per lane column: double-buffered x/out/sel blocks + ~6 live (Cout, T) f32 temps.
    bytes_per_col = 4 * (2 * Cin + 2 * Cout + 6 * Cout) + 2 * 4
    T, exact = _pick_lane_tile(Lout, bytes_per_col,
                               min_blocks=2 if N == 1 else 1)
    n_j = (Lout + T - 1) // T
    assert exact or T % 128 == 0  # masked-tail path only with 128-aligned tiles

    yk = pl.pallas_call(
        _fused_kernel,
        out_shape=jax.ShapeDtypeStruct((N, Cout, Lout), jnp.float32),
        grid_spec=pltpu.PrefetchScalarGridSpec(
            num_scalar_prefetch=0,
            grid=(N, n_j),
            in_specs=[
                pl.BlockSpec((1, Cin, T), lambda n, j: (n, 0, j)),
                pl.BlockSpec((KH, KW, Cout, Cin), lambda n, j: (0, 0, 0, 0)),
                pl.BlockSpec((Cout, 1), lambda n, j: (0, 0)),
                pl.BlockSpec((Cout, 1), lambda n, j: (0, 0)),
                pl.BlockSpec((1, T), lambda n, j: (0, j)),
            ],
            out_specs=pl.BlockSpec((1, Cout, T), lambda n, j: (n, 0, j)),
        ),
        compiler_params=pltpu.CompilerParams(
            dimension_semantics=("parallel", "parallel"),
            vmem_limit_bytes=32 * 1024 * 1024,
        ),
    )(x_exp, wt, scale, shift, sel)

    # Free reshape: (N, Cout, 2H*2W) is already the final NCHW memory order.
    return yk.reshape(N, Cout, Hout, Wout)


# ----------------------------------------------------------------------------
# Pure-jnp reference (same math, no Pallas) for a sanity check
# ----------------------------------------------------------------------------
def _reference(x_nchw, weight, gamma, beta, eps=1e-5):
    N, Cin, H, W = x_nchw.shape
    _, Cout, KH, KW = weight.shape
    y = jnp.einsum("nchw,cokl->nohkwl", x_nchw, weight)
    y = y.reshape(N, Cout, H * KH, W * KW)
    mean = jnp.mean(y, axis=(0, 2, 3), keepdims=True)
    var = jnp.mean((y - mean) ** 2, axis=(0, 2, 3), keepdims=True)
    yhat = (y - mean) / jnp.sqrt(var + eps)
    yhat = yhat * gamma.reshape(1, -1, 1, 1) + beta.reshape(1, -1, 1, 1)
    return jnp.maximum(yhat, 0.0)


if __name__ == "__main__":
    N, Cin, Cout, H, W = 2, 4, 8, 16, 16
    KH = KW = 2

    key = jax.random.PRNGKey(0)
    kx, kw = jax.random.split(key)

    # Xavier-uniform init for ConvTranspose2d weight (Cin, Cout, 2, 2)
    fan_in = Cout * KH * KW
    fan_out = Cin * KH * KW
    bound = math.sqrt(6.0 / (fan_in + fan_out))
    weight = jax.random.uniform(kw, (Cin, Cout, KH, KW), jnp.float32, -bound, bound)

    gamma = jnp.ones((Cout,), jnp.float32)   # bn.weight filled with 1
    beta = jnp.zeros((Cout,), jnp.float32)   # bn.bias zeroed

    x = jax.random.normal(kx, (N, Cin, H, W), jnp.float32)

    fwd = jax.jit(trans_conv_bn_relu)
    out = jax.block_until_ready(fwd(x, weight, gamma, beta))

    ref = _reference(x, weight, gamma, beta)
    assert out.shape == (N, Cout, 2 * H, 2 * W)
    assert jnp.allclose(out, ref, atol=1e-4, rtol=1e-4)

    print("KERNEL_OK")
</pallas_src>

<mosaic_0001>
module attributes {stable_mosaic.version = 11 : i64} {
  func.func @_fused_kernel(%arg0: i32, %arg1: i32, %arg2: memref<1x4x1024xf32, #tpu.memory_space<vmem>>, %arg3: memref<2x2x8x4xf32, #tpu.memory_space<vmem>>, %arg4: memref<8x1xf32, #tpu.memory_space<vmem>>, %arg5: memref<8x1xf32, #tpu.memory_space<vmem>>, %arg6: memref<1x1024xi32, #tpu.memory_space<vmem>>, %arg7: memref<1x8x1024xf32, #tpu.memory_space<vmem>>) attributes {dimension_semantics = [#tpu.dimension_semantics<parallel>, #tpu.dimension_semantics<parallel>], iteration_bounds = array<i64: 2, 1>, scalar_prefetch = 0 : i64, scratch_operands = 0 : i64, tpu.core_type = #tpu.core_type<tc>, window_params = [{transform_indices = @transform_0, window_bounds = array<i64: 1, 4, 1024>}, {pipeline_mode = #tpu.pipeline_mode<synchronous>, transform_indices = @transform_1, window_bounds = array<i64: 2, 2, 8, 4>}, {pipeline_mode = #tpu.pipeline_mode<synchronous>, transform_indices = @transform_2, window_bounds = array<i64: 8, 1>}, {pipeline_mode = #tpu.pipeline_mode<synchronous>, transform_indices = @transform_3, window_bounds = array<i64: 8, 1>}, {transform_indices = @transform_4, window_bounds = array<i64: 1, 1024>}, {transform_indices = @transform_5, window_bounds = array<i64: 1, 8, 1024>}]} {
    %c0 = arith.constant 0 : index
    %c0_0 = arith.constant 0 : index
    %c0_1 = arith.constant 0 : index
    %0 = vector.load %arg2[%c0, %c0_0, %c0_1] : memref<1x4x1024xf32, #tpu.memory_space<vmem>>, vector<1x4x1024xf32>
    %1 = vector.shape_cast %0 : vector<1x4x1024xf32> to vector<4x1024xf32>
    %c0_2 = arith.constant 0 : index
    %c0_3 = arith.constant 0 : index
    %2 = vector.load %arg6[%c0_2, %c0_3] : memref<1x1024xi32, #tpu.memory_space<vmem>>, vector<1x1024xi32>
    %c0_4 = arith.constant 0 : index
    %c0_5 = arith.constant 0 : index
    %3 = vector.load %arg4[%c0_4, %c0_5] : memref<8x1xf32, #tpu.memory_space<vmem>>, vector<8x1xf32>
    %c0_6 = arith.constant 0 : index
    %c0_7 = arith.constant 0 : index
    %4 = vector.load %arg5[%c0_6, %c0_7] : memref<8x1xf32, #tpu.memory_space<vmem>>, vector<8x1xf32>
    %c0_8 = arith.constant 0 : index
    %c0_9 = arith.constant 0 : index
    %c0_10 = arith.constant 0 : index
    %c0_11 = arith.constant 0 : index
    %5 = vector.load %arg3[%c0_8, %c0_9, %c0_10, %c0_11] : memref<2x2x8x4xf32, #tpu.memory_space<vmem>>, vector<1x1x8x4xf32>
    %6 = vector.shape_cast %5 : vector<1x1x8x4xf32> to vector<8x4xf32>
    %cst = arith.constant dense<0.000000e+00> : vector<8x1024xf32>
    %7 = tpu.matmul %6, %1, %cst {dimension_numbers = #tpu.dot_dimension_numbers<[1], [0], [0], [1], [0, 0, 1, 1], [], []>} : vector<8x4xf32>, vector<4x1024xf32>, vector<8x1024xf32> -> vector<8x1024xf32>
    %c0_12 = arith.constant 0 : index
    %c1 = arith.constant 1 : index
    %c0_13 = arith.constant 0 : index
    %c0_14 = arith.constant 0 : index
    %8 = vector.load %arg3[%c0_12, %c1, %c0_13, %c0_14] : memref<2x2x8x4xf32, #tpu.memory_space<vmem>>, vector<1x1x8x4xf32>
    %9 = vector.shape_cast %8 : vector<1x1x8x4xf32> to vector<8x4xf32>
    %cst_15 = arith.constant dense<0.000000e+00> : vector<8x1024xf32>
    %10 = tpu.matmul %9, %1, %cst_15 {dimension_numbers = #tpu.dot_dimension_numbers<[1], [0], [0], [1], [0, 0, 1, 1], [], []>} : vector<8x4xf32>, vector<4x1024xf32>, vector<8x1024xf32> -> vector<8x1024xf32>
    %c1_16 = arith.constant 1 : index
    %c0_17 = arith.constant 0 : index
    %c0_18 = arith.constant 0 : index
    %c0_19 = arith.constant 0 : index
    %11 = vector.load %arg3[%c1_16, %c0_17, %c0_18, %c0_19] : memref<2x2x8x4xf32, #tpu.memory_space<vmem>>, vector<1x1x8x4xf32>
    %12 = vector.shape_cast %11 : vector<1x1x8x4xf32> to vector<8x4xf32>
    %cst_20 = arith.constant dense<0.000000e+00> : vector<8x1024xf32>
    %13 = tpu.matmul %12, %1, %cst_20 {dimension_numbers = #tpu.dot_dimension_numbers<[1], [0], [0], [1], [0, 0, 1, 1], [], []>} : vector<8x4xf32>, vector<4x1024xf32>, vector<8x1024xf32> -> vector<8x1024xf32>
    %c1_21 = arith.constant 1 : index
    %c1_22 = arith.constant 1 : index
    %c0_23 = arith.constant 0 : index
    %c0_24 = arith.constant 0 : index
    %14 = vector.load %arg3[%c1_21, %c1_22, %c0_23, %c0_24] : memref<2x2x8x4xf32, #tpu.memory_space<vmem>>, vector<1x1x8x4xf32>
    %15 = vector.shape_cast %14 : vector<1x1x8x4xf32> to vector<8x4xf32>
    %cst_25 = arith.constant dense<0.000000e+00> : vector<8x1024xf32>
    %16 = tpu.matmul %15, %1, %cst_25 {dimension_numbers = #tpu.dot_dimension_numbers<[1], [0], [0], [1], [0, 0, 1, 1], [], []>} : vector<8x4xf32>, vector<4x1024xf32>, vector<8x1024xf32> -> vector<8x1024xf32>
    %c0_i32 = arith.constant 0 : i32
    %17 = vector.broadcast %c0_i32 : i32 to vector<1x1024xi32>
    %18 = arith.cmpi eq, %2, %17 : vector<1x1024xi32>
    %c1_i32 = arith.constant 1 : i32
    %19 = vector.broadcast %c1_i32 : i32 to vector<1x1024xi32>
    %20 = arith.cmpi eq, %2, %19 : vector<1x1024xi32>
    %c2_i32 = arith.constant 2 : i32
    %21 = vector.broadcast %c2_i32 : i32 to vector<1x1024xi32>
    %22 = arith.cmpi eq, %2, %21 : vector<1x1024xi32>
    %23 = vector.shape_cast %22 : vector<1x1024xi1> to vector<1x1024xi1>
    %24 = vector.broadcast %23 : vector<1x1024xi1> to vector<8x1024xi1>
    %25 = arith.select %24, %13, %16 : vector<8x1024xi1>, vector<8x1024xf32>
    %26 = vector.shape_cast %20 : vector<1x1024xi1> to vector<1x1024xi1>
    %27 = vector.broadcast %26 : vector<1x1024xi1> to vector<8x1024xi1>
    %28 = arith.select %27, %10, %25 : vector<8x1024xi1>, vector<8x1024xf32>
    %29 = vector.shape_cast %18 : vector<1x1024xi1> to vector<1x1024xi1>
    %30 = vector.broadcast %29 : vector<1x1024xi1> to vector<8x1024xi1>
    %31 = arith.select %30, %7, %28 : vector<8x1024xi1>, vector<8x1024xf32>
    %32 = vector.broadcast %3 : vector<8x1xf32> to vector<8x1024xf32>
    %33 = arith.mulf %31, %32 : vector<8x1024xf32>
    %34 = vector.broadcast %4 : vector<8x1xf32> to vector<8x1024xf32>
    %35 = arith.addf %33, %34 : vector<8x1024xf32>
    %cst_26 = arith.constant 0.000000e+00 : f32
    %36 = vector.broadcast %cst_26 : f32 to vector<8x1024xf32>
    %37 = arith.maximumf %35, %36 : vector<8x1024xf32>
    %c0_27 = arith.constant 0 : index
    %c0_28 = arith.constant 0 : index
    %c0_29 = arith.constant 0 : index
    %38 = vector.load %arg7[%c0_27, %c0_28, %c0_29] : memref<1x8x1024xf32, #tpu.memory_space<vmem>>, vector<1x8x1024xf32>
    %39 = vector.shape_cast %38 : vector<1x8x1024xf32> to vector<8x1024xf32>
    %40 = vector.shape_cast %37 : vector<8x1024xf32> to vector<1x8x1024xf32>
    tpu.vector_store %arg7[%c0_27, %c0_28, %c0_29], %40 {strides = array<i32>} : memref<1x8x1024xf32, #tpu.memory_space<vmem>>, vector<1x8x1024xf32>,
    return
  }
  func.func @transform_0(%arg0: i32, %arg1: i32) -> (i32, i32, i32) {
    %c0_i32 = arith.constant 0 : i32
    %c0_i32_0 = arith.constant 0 : i32
    return %arg0, %c0_i32, %arg1 : i32, i32, i32
  }
  func.func @transform_1(%arg0: i32, %arg1: i32) -> (i32, i32, i32, i32) {
    %c0_i32 = arith.constant 0 : i32
    %c0_i32_0 = arith.constant 0 : i32
    %c0_i32_1 = arith.constant 0 : i32
    %c0_i32_2 = arith.constant 0 : i32
    %c0_i32_3 = arith.constant 0 : i32
    return %c0_i32, %c0_i32_0, %c0_i32_1, %c0_i32_2 : i32, i32, i32, i32
  }
  func.func @transform_2(%arg0: i32, %arg1: i32) -> (i32, i32) {
    %c0_i32 = arith.constant 0 : i32
    %c0_i32_0 = arith.constant 0 : i32
    %c0_i32_1 = arith.constant 0 : i32
    return %c0_i32, %c0_i32_0 : i32, i32
  }
  func.func @transform_3(%arg0: i32, %arg1: i32) -> (i32, i32) {
    %c0_i32 = arith.constant 0 : i32
    %c0_i32_0 = arith.constant 0 : i32
    %c0_i32_1 = arith.constant 0 : i32
    return %c0_i32, %c0_i32_0 : i32, i32
  }
  func.func @transform_4(%arg0: i32, %arg1: i32) -> (i32, i32) {
    %c0_i32 = arith.constant 0 : i32
    %c0_i32_0 = arith.constant 0 : i32
    return %c0_i32, %arg1 : i32, i32
  }
  func.func @transform_5(%arg0: i32, %arg1: i32) -> (i32, i32, i32) {
    %c0_i32 = arith.constant 0 : i32
    %c0_i32_0 = arith.constant 0 : i32
    return %arg0, %c0_i32, %arg1 : i32, i32, i32
  }
}

</mosaic_0001>

<llo_original>
// kernel: trans_conv_bn_relu.1
$region0: #{trans_conv_bn_relu.1}
  #allocation0 [shape = 'u32[]', space=smem, size = 0x4, offset = 0x4, fixed_abs, tag = 'smem constant byte address 0x4 - core index']
  #allocation1 [shape = 'u32[144,128]{1,0:T(1,128)}', space=vmem, size = 0x12000, scoped, tag = 'internal scratch']
  %s0 = inlined_call_operand.vmem [shape: f32[2,4,1024], index: 0, kind: input, shape index: {}]
  %s1 = inlined_call_operand.vmem [shape: f32[2,2,8,4], index: 1, kind: input, shape index: {}]
  %s2 = inlined_call_operand.vmem [shape: f32[8,1], index: 2, kind: input, shape index: {}]
  %s3 = inlined_call_operand.vmem [shape: f32[8,1], index: 3, kind: input, shape index: {}]
  %s4 = inlined_call_operand.vmem [shape: s32[1,1024], index: 4, kind: input, shape index: {}]
  %s5 = inlined_call_operand.vmem [shape: f32[2,8,1024], index: 5, kind: output, shape index: {}]
  %s6 = sld [smem:[#allocation0]]
  $region53: #{trans_conv_bn_relu.1} parent=0
    _
  %s8 = ssub.s32 1, %s6
  %s9 = scalar_select 0, %s8, %s6
  loop: start=0, step=1, limit=4
  $region2: #{trans_conv_bn_relu.1} parent=0 // loop_pre_header
    _
  $region3: #{trans_conv_bn_relu.1} parent=0 // loop_header
    %s11 = sphi 0, %s15
    %p12 = scmp.ge.s32.totalorder %s11, 4
    %s18 = sphi 0, %s30
    %s19 = sphi 0, %s26
    %s20 = sphi 0, %s18
    %s21 = sphi 0, %s19
    %s22 = sphi 0, %s20
    %s23 = sphi 0, %s21
    %s35 = sphi 0, %s37
    %s38 = sphi 0, %s35
    %s39 = sphi 0, %s38
    %s55 = sphi 0, %s39
    %s59 = sphi 0, %s59
    %s61 = sphi 0, %s59
    %s62 = sphi 0, %s61
    %s76 = sphi 0, %s62
    %s80 = sphi 0, %s80
    %s82 = sphi 0, %s80
    %s83 = sphi 0, %s82
    %s97 = sphi 0, %s83
    %s101 = sphi 0, %s101
    %s103 = sphi 0, %s101
    %s104 = sphi 0, %s103
    %s118 = sphi 0, %s104
    %s124 = sphi 0, %s126
    %s127 = sphi 0, %s124
    %s128 = sphi 0, %s127
    %s144 = sphi 0, %s128
    %s152 = sphi 0, %s154
    %s155 = sphi 0, %s152
    %s156 = sphi 0, %s155
    %s172 = sphi 0, %s156
  $region4: #{trans_conv_bn_relu.1} parent=0 // loop_header_branch
    %14 = sbr.rel (%p12) target = $region8
  $region5: #{trans_conv_bn_relu.1} parent=0 // loop_body
    %s16 = ssub.s32 %s11, 1
    %s17 = ssub.s32 %s11, 2
    %s24 = sadd.s32 1, %s19
    %p25 = scmp.ge.s32.totalorder %s24, 1
    %s26 = scalar_select %p25, 0, %s24
    %s27 = sadd.s32 1, %s18
    %s28 = scalar_select %p25, %s27, %s18
    %p29 = scmp.ge.s32.totalorder %s28, 2
    %s30 = scalar_select %p29, 0, %s28
    %s31 = ssub.s32 %s18, %s30
    %s32 = ssub.s32 %s19, %s26
    %s33 = sor.u32 %s31, %s32
    %p34 = scmp.eq.s32.totalorder %s33, 0
    %s36 = sadd.s32 %s35, 1
    %s37 = scalar_select %p34, %s35, %s36
    %p40 = pneg %p34
    %p41 = scmp.eq.s32.totalorder %s11, 1
    %p42 = por %p40, %p41
    %p43 = scmp.ne.s32.totalorder %s35, %s38
    %p44 = scmp.eq.s32.totalorder %s11, 0
    %p45 = por %p43, %p44
    %p46 = scmp.ne.s32.totalorder %s35, %s38
    %p47 = scmp.eq.s32.totalorder %s16, 1
    %p48 = por %p46, %p47
    %p49 = scmp.ne.s32.totalorder %s38, %s39
    %p50 = scmp.eq.s32.totalorder %s16, 0
    %p51 = por %p49, %p50
    %p52 = scmp.ne.s32.totalorder %s38, %s39
    %p53 = scmp.eq.s32.totalorder %s17, 1
    %p54 = por %p52, %p53
    %p56 = scmp.ne.s32.totalorder %s39, %s55
    %p57 = scmp.eq.s32.totalorder %s17, 0
    %p58 = por %p56, %p57
    %s60 = sadd.s32 %s59, 1
    %p63 = scmp.eq.s32.totalorder %s11, 1
    %p64 = scmp.ne.s32.totalorder %s59, %s61
    %p65 = scmp.eq.s32.totalorder %s11, 0
    %p66 = por %p64, %p65
    %p67 = scmp.ne.s32.totalorder %s59, %s61
    %p68 = scmp.eq.s32.totalorder %s16, 1
    %p69 = por %p67, %p68
    %p70 = scmp.ne.s32.totalorder %s61, %s62
    %p71 = scmp.eq.s32.totalorder %s16, 0
    %p72 = por %p70, %p71
    %p73 = scmp.ne.s32.totalorder %s61, %s62
    %p74 = scmp.eq.s32.totalorder %s17, 1
    %p75 = por %p73, %p74
    %p77 = scmp.ne.s32.totalorder %s62, %s76
    %p78 = scmp.eq.s32.totalorder %s17, 0
    %p79 = por %p77, %p78
    %s81 = sadd.s32 %s80, 1
    %p84 = scmp.eq.s32.totalorder %s11, 1
    %p85 = scmp.ne.s32.totalorder %s80, %s82
    %p86 = scmp.eq.s32.totalorder %s11, 0
    %p87 = por %p85, %p86
    %p88 = scmp.ne.s32.totalorder %s80, %s82
    %p89 = scmp.eq.s32.totalorder %s16, 1
    %p90 = por %p88, %p89
    %p91 = scmp.ne.s32.totalorder %s82, %s83
    %p92 = scmp.eq.s32.totalorder %s16, 0
    %p93 = por %p91, %p92
    %p94 = scmp.ne.s32.totalorder %s82, %s83
    %p95 = scmp.eq.s32.totalorder %s17, 1
    %p96 = por %p94, %p95
    %p98 = scmp.ne.s32.totalorder %s83, %s97
    %p99 = scmp.eq.s32.totalorder %s17, 0
    %p100 = por %p98, %p99
    %s102 = sadd.s32 %s101, 1
    %p105 = scmp.eq.s32.totalorder %s11, 1
    %p106 = scmp.ne.s32.totalorder %s101, %s103
    %p107 = scmp.eq.s32.totalorder %s11, 0
    %p108 = por %p106, %p107
    %p109 = scmp.ne.s32.totalorder %s101, %s103
    %p110 = scmp.eq.s32.totalorder %s16, 1
    %p111 = por %p109, %p110
    %p112 = scmp.ne.s32.totalorder %s103, %s104
    %p113 = scmp.eq.s32.totalorder %s16, 0
    %p114 = por %p112, %p113
    %p115 = scmp.ne.s32.totalorder %s103, %s104
    %p116 = scmp.eq.s32.totalorder %s17, 1
    %p117 = por %p115, %p116
    %p119 = scmp.ne.s32.totalorder %s104, %s118
    %p120 = scmp.eq.s32.totalorder %s17, 0
    %p121 = por %p119, %p120
    %s122 = ssub.s32 %s19, %s26
    %p123 = scmp.eq.s32.totalorder %s122, 0
    %s125 = sadd.s32 %s124, 1
    %s126 = scalar_select %p123, %s124, %s125
    %p129 = pneg %p123
    %p130 = scmp.eq.s32.totalorder %s11, 1
    %p131 = por %p129, %p130
    %p132 = scmp.ne.s32.totalorder %s124, %s127
    %p133 = scmp.eq.s32.totalorder %s11, 0
    %p134 = por %p132, %p133
    %p135 = scmp.ne.s32.totalorder %s124, %s127
    %p136 = scmp.eq.s32.totalorder %s16, 1
    %p137 = por %p135, %p136
    %p138 = scmp.ne.s32.totalorder %s127, %s128
    %p139 = scmp.eq.s32.totalorder %s16, 0
    %p140 = por %p138, %p139
    %p141 = scmp.ne.s32.totalorder %s127, %s128
    %p142 = scmp.eq.s32.totalorder %s17, 1
    %p143 = por %p141, %p142
    %p145 = scmp.ne.s32.totalorder %s128, %s144
    %p146 = scmp.eq.s32.totalorder %s17, 0
    %p147 = por %p145, %p146
    %s148 = ssub.s32 %s18, %s30
    %s149 = ssub.s32 %s19, %s26
    %s150 = sor.u32 %s148, %s149
    %p151 = scmp.eq.s32.totalorder %s150, 0
    %s153 = sadd.s32 %s152, 1
    %s154 = scalar_select %p151, %s152, %s153
    %p157 = pneg %p151
    %p158 = scmp.eq.s32.totalorder %s11, 1
    %p159 = por %p157, %p158
    %p160 = scmp.ne.s32.totalorder %s152, %s155
    %p161 = scmp.eq.s32.totalorder %s11, 0
    %p162 = por %p160, %p161
    %p163 = scmp.ne.s32.totalorder %s152, %s155
    %p164 = scmp.eq.s32.totalorder %s16, 1
    %p165 = por %p163, %p164
    %p166 = scmp.ne.s32.totalorder %s155, %s156
    %p167 = scmp.eq.s32.totalorder %s16, 0
    %p168 = por %p166, %p167
    %p169 = scmp.ne.s32.totalorder %s155, %s156
    %p170 = scmp.eq.s32.totalorder %s17, 1
    %p171 = por %p169, %p170
    %p173 = scmp.ne.s32.totalorder %s156, %s172
    %p174 = scmp.eq.s32.totalorder %s17, 0
    %p175 = por %p173, %p174
    %p176 = scmp.le.s32.totalorder 1, %s11
    %p177 = scmp.lt.s32.totalorder %s11, 3
    %p178 = pnand %p176, %p177
    %p179 = pneg %p178
    // Predicated region
    $region9: #{trans_conv_bn_relu.1} parent=5 // pred_check
      _
    $region10: #{trans_conv_bn_relu.1} parent=5 // pred_check_branch
      %181 = sbr.rel (%p178) target = $region12
    $region11: #{trans_conv_bn_relu.1} parent=5 // pred_region
      %s182 = ssub.s32 %s11, 1
      // Predicated region
      $region13: #{trans_conv_bn_relu.1} parent=11 // pred_check
        %p183 = pneg %p72
      $region14: #{trans_conv_bn_relu.1} parent=11 // pred_check_branch
        %185 = sbr.rel (%p183) target = $region16
      $region15: #{trans_conv_bn_relu.1} parent=11 // pred_region
        _
      $region16: #{trans_conv_bn_relu.1} parent=11 // pred_fallthru
        _
      // Predicated region
      $region17: #{trans_conv_bn_relu.1} parent=11 // pred_check
        %p186 = pneg %p93
      $region18: #{trans_conv_bn_relu.1} parent=11 // pred_check_branch
        %188 = sbr.rel (%p186) target = $region20
      $region19: #{trans_conv_bn_relu.1} parent=11 // pred_region
        _
      $region20: #{trans_conv_bn_relu.1} parent=11 // pred_fallthru
        _
      // Predicated region
      $region21: #{trans_conv_bn_relu.1} parent=11 // pred_check
        %p189 = pneg %p114
      $region22: #{trans_conv_bn_relu.1} parent=11 // pred_check_branch
        %191 = sbr.rel (%p189) target = $region24
      $region23: #{trans_conv_bn_relu.1} parent=11 // pred_region
        _
      $region24: #{trans_conv_bn_relu.1} parent=11 // pred_fallthru
        _
      // Predicated region
      $region25: #{trans_conv_bn_relu.1} parent=11 // pred_check
        %p192 = pneg %p140
      $region26: #{trans_conv_bn_relu.1} parent=11 // pred_check_branch
        %194 = sbr.rel (%p192) target = $region28
      $region27: #{trans_conv_bn_relu.1} parent=11 // pred_region
        %s195 = smul.u32 8, %s21
        %p196 = scmp.lt.s32.totalorder %s195, 7
        %s197 = scalar_select %p196, %s195, 7
        %s198 = scalar_lea.vmem %s4, %s197
        %s199 = smul.u32 8, %s21
      $region28: #{trans_conv_bn_relu.1} parent=11 // pred_fallthru
        _
    $region12: #{trans_conv_bn_relu.1} parent=5 // pred_fallthru
      _
    %p200 = scmp.lt.s32.totalorder %s11, 2
    // Predicated region
    $region29: #{trans_conv_bn_relu.1} parent=5 // pred_check
      %p201 = pneg %p200
    $region30: #{trans_conv_bn_relu.1} parent=5 // pred_check_branch
      %203 = sbr.rel (%p201) target = $region32
    $region31: #{trans_conv_bn_relu.1} parent=5 // pred_region
      // Predicated region
      $region33: #{trans_conv_bn_relu.1} parent=31 // pred_check
        %p204 = pneg %p45
      $region34: #{trans_conv_bn_relu.1} parent=31 // pred_check_branch
        %206 = sbr.rel (%p204) target = $region36
      $region35: #{trans_conv_bn_relu.1} parent=31 // pred_region
        %s207 = smul.u32 8, %s19
        %p208 = scmp.lt.s32.totalorder %s18, 1
        %s209 = scalar_select %p208, %s18, 1
        %p210 = scmp.lt.s32.totalorder %s207, 7
        %s211 = scalar_select %p210, %s207, 7
        %s212 = smul.addr %s209, 8
        %s213 = sadd.s32 %s211, %s212
        %s214 = smul.addr %s213, 4
        %s215 = scalar_lea.vmem %s0, %s214
        %s216 = smul.u32 8, %s19
      $region36: #{trans_conv_bn_relu.1} parent=31 // pred_fallthru
        _
    $region32: #{trans_conv_bn_relu.1} parent=5 // pred_fallthru
      _
    %p217 = scmp.le.s32.totalorder 1, %s11
    %p218 = scmp.lt.s32.totalorder %s11, 3
    %p219 = pnand %p217, %p218
    %p220 = pneg %p219
    // Predicated region
    $region37: #{trans_conv_bn_relu.1} parent=5 // pred_check
      _
    $region38: #{trans_conv_bn_relu.1} parent=5 // pred_check_branch
      %222 = sbr.rel (%p219) target = $region40
    $region39: #{trans_conv_bn_relu.1} parent=5 // pred_region
      %s223 = ssub.s32 %s11, 1
      %s224 = smul.u32 8, %s21
      %p225 = scmp.lt.s32.totalorder %s20, 1
      %s226 = scalar_select %p225, %s20, 1
      %p227 = scmp.lt.s32.totalorder %s224, 7
      %s228 = scalar_select %p227, %s224, 7
      %s229 = smul.addr %s226, 8
      %s230 = sadd.s32 %s228, %s229
      %s231 = smul.addr %s230, 4
      %s232 = scalar_lea.vmem %s0, %s231
      %p233 = pneg %p51
      %p234 = pneg %p48
      %p235 = pneg %p72
      %p236 = pneg %p69
      %p237 = pneg %p93
      %p238 = pneg %p90
      %p239 = pneg %p114
      %p240 = pneg %p111
      %s241 = smul.u32 8, %s21
      %p242 = scmp.lt.s32.totalorder %s241, 7
      %s243 = scalar_select %p242, %s241, 7
      %s244 = scalar_lea.vmem %s4, %s243
      %p245 = pneg %p140
      %p246 = pneg %p137
      %p247 = pneg %p168
      %p248 = pneg %p165
      %s249 = smul.u32 8, %s21
      %p250 = scmp.lt.s32.totalorder %s20, 1
      %s251 = scalar_select %p250, %s20, 1
      %p252 = scmp.lt.s32.totalorder %s249, 7
      %s253 = scalar_select %p252, %s249, 7
      %s254 = smul.addr %s251, 8
      %s255 = sadd.s32 %s253, %s254
      %s256 = smul.addr %s255, 8
      %s257 = scalar_lea.vmem %s5, %s256
      %s258 = smul.u32 8, %s21
      %p259 = scmp.lt.s32.totalorder %s20, 1
      %s260 = scalar_select %p259, %s20, 1
      %p261 = scmp.lt.s32.totalorder %s258, 7
      %s262 = scalar_select %p261, %s258, 7
      %s263 = smul.addr %s260, 8
      %s264 = sadd.s32 %s262, %s263
      %s265 = smul.addr %s264, 4
      %s266 = scalar_lea.vmem %s0, %s265
      %s267 = smul.u32 8, %s21
      %s268 = smul.u32 8, %s21
      %p269 = scmp.lt.s32.totalorder %s268, 7
      %s270 = scalar_select %p269, %s268, 7
      %s271 = scalar_lea.vmem %s4, %s270
      %s272 = smul.u32 8, %s21
      %s273 = smul.u32 8, %s21
      %p274 = scmp.lt.s32.totalorder %s20, 1
      %s275 = scalar_select %p274, %s20, 1
      %p276 = scmp.lt.s32.totalorder %s273, 7
      %s277 = scalar_select %p276, %s273, 7
      %s278 = smul.addr %s275, 8
      %s279 = sadd.s32 %s277, %s278
      %s280 = smul.addr %s279, 8
      %s281 = scalar_lea.vmem %s5, %s280
      %s282 = smul.u32 8, %s21
      %v283 = vld [vmem:[%s266] sm:$0xff]
      %v284 = vld [vmem:[%s266 + $0x8] sm:$0xff]
      %v285 = vld [vmem:[%s266 + $0x10] sm:$0xff]
      %v286 = vld [vmem:[%s266 + $0x18] sm:$0xff]
      %v287 = vld [vmem:[%s271] sm:$0xff]
      %v288 = vld [vmem:[%s2] sm:$0xff]
      %v289 = vld [vmem:[%s3] sm:$0xff]
      %v290 = vld [vmem:[%s1] sm:$0xff]
      %v295 = vcombine.high %v283, %v283
      %v296 = vcombine.high %v284, %v284
      %v297 = vcombine.high %v285, %v285
      %v298 = vcombine.high %v286, %v286
      %vm299 = vcmask 31744
      %v301 = vsel %vm299, %v290, 0
      %vm303 = vcmask 1043456
      %v304 = vsel %vm303, %v283, 0
      %v306 = vsel %vm303, %v295, 0
      %v308 = vsel %vm303, %v284, 0
      %v310 = vsel %vm303, %v296, 0
      %v312 = vsel %vm303, %v285, 0
      %v314 = vsel %vm303, %v297, 0
      %v316 = vsel %vm303, %v286, 0
      %v318 = vsel %vm303, %v298, 0
      %320 = vmatprep.subr.mxu0 %v306
      %321 = vmatpush1.msra.mxu0 %v304
      %322 = vmatprep.subr.mxu0 0.0
      %323 = vmatpush1.msra.mxu0 0.0
      %324 = vmatprep.subr.mxu0 0.0
      %325 = vmatpush1.msra.mxu0 0.0
      %326 = vmatprep.subr.mxu0 0.0
      %327 = vmatpush1.msra.mxu0 0.0
      %328 = vmatprep.subr.mxu0 0.0
      %329 = vmatpush1.msra.mxu0 0.0
      %330 = vmatprep.subr.mxu0 0.0
      %331 = vmatpush1.msra.mxu0 0.0
      %332 = vmatprep.subr.mxu0 0.0
      %333 = vmatpush1.msra.mxu0 0.0
      %334 = vmatprep.subr.mxu0 0.0
      %335 = vmatpush1.msra.mxu0 0.0
      %336 = vmatprep.subr.mxu0 0.0
      %337 = vmatpush1.msra.mxu0 0.0
      %338 = vmatprep.subr.mxu0 0.0
      %339 = vmatpush1.msra.mxu0 0.0
      %340 = vmatprep.subr.mxu0 0.0
      %341 = vmatpush1.msra.mxu0 0.0
      %342 = vmatprep.subr.mxu0 0.0
      %343 = vmatpush1.msra.mxu0 0.0
      %344 = vmatprep.subr.mxu0 0.0
      %345 = vmatpush1.msra.mxu0 0.0
      %346 = vmatprep.subr.mxu0 0.0
      %347 = vmatpush1.msra.mxu0 0.0
      %348 = vmatprep.subr.mxu0 0.0
      %349 = vmatpush1.msra.mxu0 0.0
      %350 = vmatprep.subr.mxu0 0.0
      %351 = vmatpush1.msra.mxu0 0.0
      %352 = vmatprep.subr.mxu0 0.0
      %353 = vmatpush1.msra.mxu0 0.0
      %354 = vmatprep.subr.mxu0 0.0
      %355 = vmatpush1.msra.mxu0 0.0
      %356 = vmatprep.subr.mxu0 0.0
      %357 = vmatpush1.msra.mxu0 0.0
      %358 = vmatprep.subr.mxu0 0.0
      %359 = vmatpush1.msra.mxu0 0.0
      %360 = vmatprep.subr.mxu0 0.0
      %361 = vmatpush1.msra.mxu0 0.0
      %362 = vmatprep.subr.mxu0 0.0
      %363 = vmatpush1.msra.mxu0 0.0
      %364 = vmatprep.subr.mxu0 0.0
      %365 = vmatpush1.msra.mxu0 0.0
      %366 = vmatprep.subr.mxu0 0.0
      %367 = vmatpush1.msra.mxu0 0.0
      %368 = vmatprep.subr.mxu0 0.0
      %369 = vmatpush1.msra.mxu0 0.0
      %370 = vmatprep.subr.mxu0 0.0
      %371 = vmatpush1.msra.mxu0 0.0
      %372 = vmatprep.subr.mxu0 0.0
      %373 = vmatpush1.msra.mxu0 0.0
      %374 = vmatprep.subr.mxu0 0.0
      %375 = vmatpush1.msra.mxu0 0.0
      %376 = vmatprep.subr.mxu0 0.0
      %377 = vmatpush1.msra.mxu0 0.0
      %378 = vmatprep.subr.mxu0 0.0
      %379 = vmatpush1.msra.mxu0 0.0
      %380 = vmatprep.subr.mxu0 0.0
      %381 = vmatpush1.msra.mxu0 0.0
      %382 = vmatprep.subr.mxu0 0.0
      %383 = vmatpush1.msra.mxu0 0.0
      %384 = vmatprep.mubr.f32.mxu0 0.0
      %385 = vmatmul.mubr.f32.gmra.mrb[0].mxu0 %v301
      %v386 = vpop.f32.mrb[0].mxu0
      %v387 = vadd.f32 0.0, %v386
      %v388 = vpop.f32.mrb[0].mxu0
      %v389 = vadd.f32 0.0, %v388
      %390 = vdwg.mxu0
      %391 = vmatprep.subr.mxu0 %v310
      %392 = vmatpush1.msra.mxu0 %v308
      %393 = vmatprep.subr.mxu0 0.0
      %394 = vmatpush1.msra.mxu0 0.0
      %395 = vmatprep.subr.mxu0 0.0
      %396 = vmatpush1.msra.mxu0 0.0
      %397 = vmatprep.subr.mxu0 0.0
      %398 = vmatpush1.msra.mxu0 0.0
      %399 = vmatprep.subr.mxu0 0.0
      %400 = vmatpush1.msra.mxu0 0.0
      %401 = vmatprep.subr.mxu0 0.0
      %402 = vmatpush1.msra.mxu0 0.0
      %403 = vmatprep.subr.mxu0 0.0
      %404 = vmatpush1.msra.mxu0 0.0
      %405 = vmatprep.subr.mxu0 0.0
      %406 = vmatpush1.msra.mxu0 0.0
      %407 = vmatprep.subr.mxu0 0.0
      %408 = vmatpush1.msra.mxu0 0.0
      %409 = vmatprep.subr.mxu0 0.0
      %410 = vmatpush1.msra.mxu0 0.0
      %411 = vmatprep.subr.mxu0 0.0
      %412 = vmatpush1.msra.mxu0 0.0
      %413 = vmatprep.subr.mxu0 0.0
      %414 = vmatpush1.msra.mxu0 0.0
      %415 = vmatprep.subr.mxu0 0.0
      %416 = vmatpush1.msra.mxu0 0.0
      %417 = vmatprep.subr.mxu0 0.0
      %418 = vmatpush1.msra.mxu0 0.0
      %419 = vmatprep.subr.mxu0 0.0
      %420 = vmatpush1.msra.mxu0 0.0
      %421 = vmatprep.subr.mxu0 0.0
      %422 = vmatpush1.msra.mxu0 0.0
      %423 = vmatprep.subr.mxu0 0.0
      %424 = vmatpush1.msra.mxu0 0.0
      %425 = vmatprep.subr.mxu0 0.0
      %426 = vmatpush1.msra.mxu0 0.0
      %427 = vmatprep.subr.mxu0 0.0
      %428 = vmatpush1.msra.mxu0 0.0
      %429 = vmatprep.subr.mxu0 0.0
      %430 = vmatpush1.msra.mxu0 0.0
      %431 = vmatprep.subr.mxu0 0.0
      %432 = vmatpush1.msra.mxu0 0.0
      %433 = vmatprep.subr.mxu0 0.0
      %434 = vmatpush1.msra.mxu0 0.0
      %435 = vmatprep.subr.mxu0 0.0
      %436 = vmatpush1.msra.mxu0 0.0
      %437 = vmatprep.subr.mxu0 0.0
      %438 = vmatpush1.msra.mxu0 0.0
      %439 = vmatprep.subr.mxu0 0.0
      %440 = vmatpush1.msra.mxu0 0.0
      %441 = vmatprep.subr.mxu0 0.0
      %442 = vmatpush1.msra.mxu0 0.0
      %443 = vmatprep.subr.mxu0 0.0
      %444 = vmatpush1.msra.mxu0 0.0
      %445 = vmatprep.subr.mxu0 0.0
      %446 = vmatpush1.msra.mxu0 0.0
      %447 = vmatprep.subr.mxu0 0.0
      %448 = vmatpush1.msra.mxu0 0.0
      %449 = vmatprep.subr.mxu0 0.0
      %450 = vmatpush1.msra.mxu0 0.0
      %451 = vmatprep.subr.mxu0 0.0
      %452 = vmatpush1.msra.mxu0 0.0
      %453 = vmatprep.subr.mxu0 0.0
      %454 = vmatpush1.msra.mxu0 0.0
      %455 = vmatprep.mubr.f32.mxu0 0.0
      %456 = vmatmul.mubr.f32.gmra.mrb[0].mxu0 %v301
      %v457 = vpop.f32.mrb[0].mxu0
      %v458 = vadd.f32 0.0, %v457
      %v459 = vpop.f32.mrb[0].mxu0
      %v460 = vadd.f32 0.0, %v459
      %461 = vdwg.mxu0
      %462 = vmatprep.subr.mxu0 %v314
      %463 = vmatpush1.msra.mxu0 %v312
      %464 = vmatprep.subr.mxu0 0.0
      %465 = vmatpush1.msra.mxu0 0.0
      %466 = vmatprep.subr.mxu0 0.0
      %467 = vmatpush1.msra.mxu0 0.0
      %468 = vmatprep.subr.mxu0 0.0
      %469 = vmatpush1.msra.mxu0 0.0
      %470 = vmatprep.subr.mxu0 0.0
      %471 = vmatpush1.msra.mxu0 0.0
      %472 = vmatprep.subr.mxu0 0.0
      %473 = vmatpush1.msra.mxu0 0.0
      %474 = vmatprep.subr.mxu0 0.0
      %475 = vmatpush1.msra.mxu0 0.0
      %476 = vmatprep.subr.mxu0 0.0
      %477 = vmatpush1.msra.mxu0 0.0
      %478 = vmatprep.subr.mxu0 0.0
      %479 = vmatpush1.msra.mxu0 0.0
      %480 = vmatprep.subr.mxu0 0.0
      %481 = vmatpush1.msra.mxu0 0.0
      %482 = vmatprep.subr.mxu0 0.0
      %483 = vmatpush1.msra.mxu0 0.0
      %484 = vmatprep.subr.mxu0 0.0
      %485 = vmatpush1.msra.mxu0 0.0
      %486 = vmatprep.subr.mxu0 0.0
      %487 = vmatpush1.msra.mxu0 0.0
      %488 = vmatprep.subr.mxu0 0.0
      %489 = vmatpush1.msra.mxu0 0.0
      %490 = vmatprep.subr.mxu0 0.0
      %491 = vmatpush1.msra.mxu0 0.0
      %492 = vmatprep.subr.mxu0 0.0
      %493 = vmatpush1.msra.mxu0 0.0
      %494 = vmatprep.subr.mxu0 0.0
      %495 = vmatpush1.msra.mxu0 0.0
      %496 = vmatprep.subr.mxu0 0.0
      %497 = vmatpush1.msra.mxu0 0.0
      %498 = vmatprep.subr.mxu0 0.0
      %499 = vmatpush1.msra.mxu0 0.0
      %500 = vmatprep.subr.mxu0 0.0
      %501 = vmatpush1.msra.mxu0 0.0
      %502 = vmatprep.subr.mxu0 0.0
      %503 = vmatpush1.msra.mxu0 0.0
      %504 = vmatprep.subr.mxu0 0.0
      %505 = vmatpush1.msra.mxu0 0.0
      %506 = vmatprep.subr.mxu0 0.0
      %507 = vmatpush1.msra.mxu0 0.0
      %508 = vmatprep.subr.mxu0 0.0
      %509 = vmatpush1.msra.mxu0 0.0
      %510 = vmatprep.subr.mxu0 0.0
      %511 = vmatpush1.msra.mxu0 0.0
      %512 = vmatprep.subr.mxu0 0.0
      %513 = vmatpush1.msra.mxu0 0.0
      %514 = vmatprep.subr.mxu0 0.0
      %515 = vmatpush1.msra.mxu0 0.0
      %516 = vmatprep.subr.mxu0 0.0
      %517 = vmatpush1.msra.mxu0 0.0
      %518 = vmatprep.subr.mxu0 0.0
      %519 = vmatpush1.msra.mxu0 0.0
      %520 = vmatprep.subr.mxu0 0.0
      %521 = vmatpush1.msra.mxu0 0.0
      %522 = vmatprep.subr.mxu0 0.0
      %523 = vmatpush1.msra.mxu0 0.0
      %524 = vmatprep.subr.mxu0 0.0
      %525 = vmatpush1.msra.mxu0 0.0
      %526 = vmatprep.mubr.f32.mxu0 0.0
      %527 = vmatmul.mubr.f32.gmra.mrb[0].mxu0 %v301
      %v528 = vpop.f32.mrb[0].mxu0
      %v529 = vadd.f32 0.0, %v528
      %v530 = vpop.f32.mrb[0].mxu0
      %v531 = vadd.f32 0.0, %v530
      %532 = vdwg.mxu0
      %533 = vmatprep.subr.mxu0 %v318
      %534 = vmatpush1.msra.mxu0 %v316
      %535 = vmatprep.subr.mxu0 0.0
      %536 = vmatpush1.msra.mxu0 0.0
      %537 = vmatprep.subr.mxu0 0.0
      %538 = vmatpush1.msra.mxu0 0.0
      %539 = vmatprep.subr.mxu0 0.0
      %540 = vmatpush1.msra.mxu0 0.0
      %541 = vmatprep.subr.mxu0 0.0
      %542 = vmatpush1.msra.mxu0 0.0
      %543 = vmatprep.subr.mxu0 0.0
      %544 = vmatpush1.msra.mxu0 0.0
      %545 = vmatprep.subr.mxu0 0.0
      %546 = vmatpush1.msra.mxu0 0.0
      %547 = vmatprep.subr.mxu0 0.0
      %548 = vmatpush1.msra.mxu0 0.0
      %549 = vmatprep.subr.mxu0 0.0
      %550 = vmatpush1.msra.mxu0 0.0
      %551 = vmatprep.subr.mxu0 0.0
      %552 = vmatpush1.msra.mxu0 0.0
      %553 = vmatprep.subr.mxu0 0.0
      %554 = vmatpush1.msra.mxu0 0.0
      %555 = vmatprep.subr.mxu0 0.0
      %556 = vmatpush1.msra.mxu0 0.0
      %557 = vmatprep.subr.mxu0 0.0
      %558 = vmatpush1.msra.mxu0 0.0
      %559 = vmatprep.subr.mxu0 0.0
      %560 = vmatpush1.msra.mxu0 0.0
      %561 = vmatprep.subr.mxu0 0.0
      %562 = vmatpush1.msra.mxu0 0.0
      %563 = vmatprep.subr.mxu0 0.0
      %564 = vmatpush1.msra.mxu0 0.0
      %565 = vmatprep.subr.mxu0 0.0
      %566 = vmatpush1.msra.mxu0 0.0
      %567 = vmatprep.subr.mxu0 0.0
      %568 = vmatpush1.msra.mxu0 0.0
      %569 = vmatprep.subr.mxu0 0.0
      %570 = vmatpush1.msra.mxu0 0.0
      %571 = vmatprep.subr.mxu0 0.0
      %572 = vmatpush1.msra.mxu0 0.0
      %573 = vmatprep.subr.mxu0 0.0
      %574 = vmatpush1.msra.mxu0 0.0
      %575 = vmatprep.subr.mxu0 0.0
      %576 = vmatpush1.msra.mxu0 0.0
      %577 = vmatprep.subr.mxu0 0.0
      %578 = vmatpush1.msra.mxu0 0.0
      %579 = vmatprep.subr.mxu0 0.0
      %580 = vmatpush1.msra.mxu0 0.0
      %581 = vmatprep.subr.mxu0 0.0
      %582 = vmatpush1.msra.mxu0 0.0
      %583 = vmatprep.subr.mxu0 0.0
      %584 = vmatpush1.msra.mxu0 0.0
      %585 = vmatprep.subr.mxu0 0.0
      %586 = vmatpush1.msra.mxu0 0.0
      %587 = vmatprep.subr.mxu0 0.0
      %588 = vmatpush1.msra.mxu0 0.0
      %589 = vmatprep.subr.mxu0 0.0
      %590 = vmatpush1.msra.mxu0 0.0
      %591 = vmatprep.subr.mxu0 0.0
      %592 = vmatpush1.msra.mxu0 0.0
      %593 = vmatprep.subr.mxu0 0.0
      %594 = vmatpush1.msra.mxu0 0.0
      %595 = vmatprep.subr.mxu0 0.0
      %596 = vmatpush1.msra.mxu0 0.0
      %597 = vmatprep.mubr.f32.mxu0 0.0
      %598 = vmatmul.mubr.f32.gmra.mrb[0].mxu0 %v301
      %v599 = vpop.f32.mrb[0].mxu0
      %v600 = vadd.f32 0.0, %v599
      %v601 = vpop.f32.mrb[0].mxu0
      %v602 = vadd.f32 0.0, %v601
      %603 = vdwg.mxu0
      %s604 = scalar_lea.vmem %s1, 8
      %v605 = vld [vmem:[%s604] sm:$0xff]
      %v607 = vsel %vm299, %v605, 0
      %609 = vmatprep.subr.mxu0 %v306
      %610 = vmatpush1.msra.mxu0 %v304
      %611 = vmatprep.subr.mxu0 0.0
      %612 = vmatpush1.msra.mxu0 0.0
      %613 = vmatprep.subr.mxu0 0.0
      %614 = vmatpush1.msra.mxu0 0.0
      %615 = vmatprep.subr.mxu0 0.0
      %616 = vmatpush1.msra.mxu0 0.0
      %617 = vmatprep.subr.mxu0 0.0
      %618 = vmatpush1.msra.mxu0 0.0
      %619 = vmatprep.subr.mxu0 0.0
      %620 = vmatpush1.msra.mxu0 0.0
      %621 = vmatprep.subr.mxu0 0.0
      %622 = vmatpush1.msra.mxu0 0.0
      %623 = vmatprep.subr.mxu0 0.0
      %624 = vmatpush1.msra.mxu0 0.0
      %625 = vmatprep.subr.mxu0 0.0
      %626 = vmatpush1.msra.mxu0 0.0
      %627 = vmatprep.subr.mxu0 0.0
      %628 = vmatpush1.msra.mxu0 0.0
      %629 = vmatprep.subr.mxu0 0.0
      %630 = vmatpush1.msra.mxu0 0.0
      %631 = vmatprep.subr.mxu0 0.0
      %632 = vmatpush1.msra.mxu0 0.0
      %633 = vmatprep.subr.mxu0 0.0
      %634 = vmatpush1.msra.mxu0 0.0
      %635 = vmatprep.subr.mxu0 0.0
      %636 = vmatpush1.msra.mxu0 0.0
      %637 = vmatprep.subr.mxu0 0.0
      %638 = vmatpush1.msra.mxu0 0.0
      %639 = vmatprep.subr.mxu0 0.0
      %640 = vmatpush1.msra.mxu0 0.0
      %641 = vmatprep.subr.mxu0 0.0
      %642 = vmatpush1.msra.mxu0 0.0
      %643 = vmatprep.subr.mxu0 0.0
      %644 = vmatpush1.msra.mxu0 0.0
      %645 = vmatprep.subr.mxu0 0.0
      %646 = vmatpush1.msra.mxu0 0.0
      %647 = vmatprep.subr.mxu0 0.0
      %648 = vmatpush1.msra.mxu0 0.0
      %649 = vmatprep.subr.mxu0 0.0
      %650 = vmatpush1.msra.mxu0 0.0
      %651 = vmatprep.subr.mxu0 0.0
      %652 = vmatpush1.msra.mxu0 0.0
      %653 = vmatprep.subr.mxu0 0.0
      %654 = vmatpush1.msra.mxu0 0.0
      %655 = vmatprep.subr.mxu0 0.0
      %656 = vmatpush1.msra.mxu0 0.0
      %657 = vmatprep.subr.mxu0 0.0
      %658 = vmatpush1.msra.mxu0 0.0
      %659 = vmatprep.subr.mxu0 0.0
      %660 = vmatpush1.msra.mxu0 0.0
      %661 = vmatprep.subr.mxu0 0.0
      %662 = vmatpush1.msra.mxu0 0.0
      %663 = vmatprep.subr.mxu0 0.0
      %664 = vmatpush1.msra.mxu0 0.0
      %665 = vmatprep.subr.mxu0 0.0
      %666 = vmatpush1.msra.mxu0 0.0
      %667 = vmatprep.subr.mxu0 0.0
      %668 = vmatpush1.msra.mxu0 0.0
      %669 = vmatprep.subr.mxu0 0.0
      %670 = vmatpush1.msra.mxu0 0.0
      %671 = vmatprep.subr.mxu0 0.0
      %672 = vmatpush1.msra.mxu0 0.0
      %673 = vmatprep.mubr.f32.mxu0 0.0
      %674 = vmatmul.mubr.f32.gmra.mrb[0].mxu0 %v607
      %v675 = vpop.f32.mrb[0].mxu0
      %v676 = vadd.f32 0.0, %v675
      %v677 = vpop.f32.mrb[0].mxu0
      %v678 = vadd.f32 0.0, %v677
      %679 = vdwg.mxu0
      %680 = vmatprep.subr.mxu0 %v310
      %681 = vmatpush1.msra.mxu0 %v308
      %682 = vmatprep.subr.mxu0 0.0
      %683 = vmatpush1.msra.mxu0 0.0
      %684 = vmatprep.subr.mxu0 0.0
      %685 = vmatpush1.msra.mxu0 0.0
      %686 = vmatprep.subr.mxu0 0.0
      %687 = vmatpush1.msra.mxu0 0.0
      %688 = vmatprep.subr.mxu0 0.0
      %689 = vmatpush1.msra.mxu0 0.0
      %690 = vmatprep.subr.mxu0 0.0
      %691 = vmatpush1.msra.mxu0 0.0
      %692 = vmatprep.subr.mxu0 0.0
      %693 = vmatpush1.msra.mxu0 0.0
      %694 = vmatprep.subr.mxu0 0.0
      %695 = vmatpush1.msra.mxu0 0.0
      %696 = vmatprep.subr.mxu0 0.0
      %697 = vmatpush1.msra.mxu0 0.0
      %698 = vmatprep.subr.mxu0 0.0
      %699 = vmatpush1.msra.mxu0 0.0
      %700 = vmatprep.subr.mxu0 0.0
      %701 = vmatpush1.msra.mxu0 0.0
      %702 = vmatprep.subr.mxu0 0.0
      %703 = vmatpush1.msra.mxu0 0.0
      %704 = vmatprep.subr.mxu0 0.0
      %705 = vmatpush1.msra.mxu0 0.0
      %706 = vmatprep.subr.mxu0 0.0
      %707 = vmatpush1.msra.mxu0 0.0
      %708 = vmatprep.subr.mxu0 0.0
      %709 = vmatpush1.msra.mxu0 0.0
      %710 = vmatprep.subr.mxu0 0.0
      %711 = vmatpush1.msra.mxu0 0.0
      %712 = vmatprep.subr.mxu0 0.0
      %713 = vmatpush1.msra.mxu0 0.0
      %714 = vmatprep.subr.mxu0 0.0
      %715 = vmatpush1.msra.mxu0 0.0
      %716 = vmatprep.subr.mxu0 0.0
      %717 = vmatpush1.msra.mxu0 0.0
      %718 = vmatprep.subr.mxu0 0.0
      %719 = vmatpush1.msra.mxu0 0.0
      %720 = vmatprep.subr.mxu0 0.0
      %721 = vmatpush1.msra.mxu0 0.0
      %722 = vmatprep.subr.mxu0 0.0
      %723 = vmatpush1.msra.mxu0 0.0
      %724 = vmatprep.subr.mxu0 0.0
      %725 = vmatpush1.msra.mxu0 0.0
      %726 = vmatprep.subr.mxu0 0.0
      %727 = vmatpush1.msra.mxu0 0.0
      %728 = vmatprep.subr.mxu0 0.0
      %729 = vmatpush1.msra.mxu0 0.0
      %730 = vmatprep.subr.mxu0 0.0
      %731 = vmatpush1.msra.mxu0 0.0
      %732 = vmatprep.subr.mxu0 0.0
      %733 = vmatpush1.msra.mxu0 0.0
      %734 = vmatprep.subr.mxu0 0.0
      %735 = vmatpush1.msra.mxu0 0.0
      %736 = vmatprep.subr.mxu0 0.0
      %737 = vmatpush1.msra.mxu0 0.0
      %738 = vmatprep.subr.mxu0 0.0
      %739 = vmatpush1.msra.mxu0 0.0
      %740 = vmatprep.subr.mxu0 0.0
      %741 = vmatpush1.msra.mxu0 0.0
      %742 = vmatprep.subr.mxu0 0.0
      %743 = vmatpush1.msra.mxu0 0.0
      %744 = vmatprep.mubr.f32.mxu0 0.0
      %745 = vmatmul.mubr.f32.gmra.mrb[0].mxu0 %v607
      %v746 = vpop.f32.mrb[0].mxu0
      %v747 = vadd.f32 0.0, %v746
      %v748 = vpop.f32.mrb[0].mxu0
      %v749 = vadd.f32 0.0, %v748
      %750 = vdwg.mxu0
      %751 = vmatprep.subr.mxu0 %v314
      %752 = vmatpush1.msra.mxu0 %v312
      %753 = vmatprep.subr.mxu0 0.0
      %754 = vmatpush1.msra.mxu0 0.0
      %755 = vmatprep.subr.mxu0 0.0
      %756 = vmatpush1.msra.mxu0 0.0
      %757 = vmatprep.subr.mxu0 0.0
      %758 = vmatpush1.msra.mxu0 0.0
      %759 = vmatprep.subr.mxu0 0.0
      %760 = vmatpush1.msra.mxu0 0.0
      %761 = vmatprep.subr.mxu0 0.0
      %762 = vmatpush1.msra.mxu0 0.0
      %763 = vmatprep.subr.mxu0 0.0
      %764 = vmatpush1.msra.mxu0 0.0
      %765 = vmatprep.subr.mxu0 0.0
      %766 = vmatpush1.msra.mxu0 0.0
      %767 = vmatprep.subr.mxu0 0.0
      %768 = vmatpush1.msra.mxu0 0.0
      %769 = vmatprep.subr.mxu0 0.0
      %770 = vmatpush1.msra.mxu0 0.0
      %771 = vmatprep.subr.mxu0 0.0
      %772 = vmatpush1.msra.mxu0 0.0
      %773 = vmatprep.subr.mxu0 0.0
      %774 = vmatpush1.msra.mxu0 0.0
      %775 = vmatprep.subr.mxu0 0.0
      %776 = vmatpush1.msra.mxu0 0.0
      %777 = vmatprep.subr.mxu0 0.0
      %778 = vmatpush1.msra.mxu0 0.0
      %779 = vmatprep.subr.mxu0 0.0
      %780 = vmatpush1.msra.mxu0 0.0
      %781 = vmatprep.subr.mxu0 0.0
      %782 = vmatpush1.msra.mxu0 0.0
      %783 = vmatprep.subr.mxu0 0.0
      %784 = vmatpush1.msra.mxu0 0.0
      %785 = vmatprep.subr.mxu0 0.0
      %786 = vmatpush1.msra.mxu0 0.0
      %787 = vmatprep.subr.mxu0 0.0
      %788 = vmatpush1.msra.mxu0 0.0
      %789 = vmatprep.subr.mxu0 0.0
      %790 = vmatpush1.msra.mxu0 0.0
      %791 = vmatprep.subr.mxu0 0.0
      %792 = vmatpush1.msra.mxu0 0.0
      %793 = vmatprep.subr.mxu0 0.0
      %794 = vmatpush1.msra.mxu0 0.0
      %795 = vmatprep.subr.mxu0 0.0
      %796 = vmatpush1.msra.mxu0 0.0
      %797 = vmatprep.subr.mxu0 0.0
      %798 = vmatpush1.msra.mxu0 0.0
      %799 = vmatprep.subr.mxu0 0.0
      %800 = vmatpush1.msra.mxu0 0.0
      %801 = vmatprep.subr.mxu0 0.0
      %802 = vmatpush1.msra.mxu0 0.0
      %803 = vmatprep.subr.mxu0 0.0
      %804 = vmatpush1.msra.mxu0 0.0
      %805 = vmatprep.subr.mxu0 0.0
      %806 = vmatpush1.msra.mxu0 0.0
      %807 = vmatprep.subr.mxu0 0.0
      %808 = vmatpush1.msra.mxu0 0.0
      %809 = vmatprep.subr.mxu0 0.0
      %810 = vmatpush1.msra.mxu0 0.0
      %811 = vmatprep.subr.mxu0 0.0
      %812 = vmatpush1.msra.mxu0 0.0
      %813 = vmatprep.subr.mxu0 0.0
      %814 = vmatpush1.msra.mxu0 0.0
      %815 = vmatprep.mubr.f32.mxu0 0.0
      %816 = vmatmul.mubr.f32.gmra.mrb[0].mxu0 %v607
      %v817 = vpop.f32.mrb[0].mxu0
      %v818 = vadd.f32 0.0, %v817
      %v819 = vpop.f32.mrb[0].mxu0
      %v820 = vadd.f32 0.0, %v819
      %821 = vdwg.mxu0
      %822 = vmatprep.subr.mxu0 %v318
      %823 = vmatpush1.msra.mxu0 %v316
      %824 = vmatprep.subr.mxu0 0.0
      %825 = vmatpush1.msra.mxu0 0.0
      %826 = vmatprep.subr.mxu0 0.0
      %827 = vmatpush1.msra.mxu0 0.0
      %828 = vmatprep.subr.mxu0 0.0
      %829 = vmatpush1.msra.mxu0 0.0
      %830 = vmatprep.subr.mxu0 0.0
      %831 = vmatpush1.msra.mxu0 0.0
      %832 = vmatprep.subr.mxu0 0.0
      %833 = vmatpush1.msra.mxu0 0.0
      %834 = vmatprep.subr.mxu0 0.0
      %835 = vmatpush1.msra.mxu0 0.0
      %836 = vmatprep.subr.mxu0 0.0
      %837 = vmatpush1.msra.mxu0 0.0
      %838 = vmatprep.subr.mxu0 0.0
      %839 = vmatpush1.msra.mxu0 0.0
      %840 = vmatprep.subr.mxu0 0.0
      %841 = vmatpush1.msra.mxu0 0.0
      %842 = vmatprep.subr.mxu0 0.0
      %843 = vmatpush1.msra.mxu0 0.0
      %844 = vmatprep.subr.mxu0 0.0
      %845 = vmatpush1.msra.mxu0 0.0
      %846 = vmatprep.subr.mxu0 0.0
      %847 = vmatpush1.msra.mxu0 0.0
      %848 = vmatprep.subr.mxu0 0.0
      %849 = vmatpush1.msra.mxu0 0.0
      %850 = vmatprep.subr.mxu0 0.0
      %851 = vmatpush1.msra.mxu0 0.0
      %852 = vmatprep.subr.mxu0 0.0
      %853 = vmatpush1.msra.mxu0 0.0
      %854 = vmatprep.subr.mxu0 0.0
      %855 = vmatpush1.msra.mxu0 0.0
      %856 = vmatprep.subr.mxu0 0.0
      %857 = vmatpush1.msra.mxu0 0.0
      %858 = vmatprep.subr.mxu0 0.0
      %859 = vmatpush1.msra.mxu0 0.0
      %860 = vmatprep.subr.mxu0 0.0
      %861 = vmatpush1.msra.mxu0 0.0
      %862 = vmatprep.subr.mxu0 0.0
      %863 = vmatpush1.msra.mxu0 0.0
      %864 = vmatprep.subr.mxu0 0.0
      %865 = vmatpush1.msra.mxu0 0.0
      %866 = vmatprep.subr.mxu0 0.0
      %867 = vmatpush1.msra.mxu0 0.0
      %868 = vmatprep.subr.mxu0 0.0
      %869 = vmatpush1.msra.mxu0 0.0
      %870 = vmatprep.subr.mxu0 0.0
      %871 = vmatpush1.msra.mxu0 0.0
      %872 = vmatprep.subr.mxu0 0.0
      %873 = vmatpush1.msra.mxu0 0.0
      %874 = vmatprep.subr.mxu0 0.0
      %875 = vmatpush1.msra.mxu0 0.0
      %876 = vmatprep.subr.mxu0 0.0
      %877 = vmatpush1.msra.mxu0 0.0
      %878 = vmatprep.subr.mxu0 0.0
      %879 = vmatpush1.msra.mxu0 0.0
      %880 = vmatprep.subr.mxu0 0.0
      %881 = vmatpush1.msra.mxu0 0.0
      %882 = vmatprep.subr.mxu0 0.0
      %883 = vmatpush1.msra.mxu0 0.0
      %884 = vmatprep.subr.mxu0 0.0
      %885 = vmatpush1.msra.mxu0 0.0
      %886 = vmatprep.mubr.f32.mxu0 0.0
      %887 = vmatmul.mubr.f32.gmra.mrb[0].mxu0 %v607
      %v888 = vpop.f32.mrb[0].mxu0
      %v889 = vadd.f32 0.0, %v888
      %v890 = vpop.f32.mrb[0].mxu0
      %v891 = vadd.f32 0.0, %v890
      %892 = vdwg.mxu0
      %s893 = scalar_lea.vmem %s1, 16
      %v894 = vld [vmem:[%s893] sm:$0xff]
      %v896 = vsel %vm299, %v894, 0
      %898 = vmatprep.subr.mxu0 %v306
      %899 = vmatpush1.msra.mxu0 %v304
      %900 = vmatprep.subr.mxu0 0.0
      %901 = vmatpush1.msra.mxu0 0.0
      %902 = vmatprep.subr.mxu0 0.0
      %903 = vmatpush1.msra.mxu0 0.0
      %904 = vmatprep.subr.mxu0 0.0
      %905 = vmatpush1.msra.mxu0 0.0
      %906 = vmatprep.subr.mxu0 0.0
      %907 = vmatpush1.msra.mxu0 0.0
      %908 = vmatprep.subr.mxu0 0.0
      %909 = vmatpush1.msra.mxu0 0.0
      %910 = vmatprep.subr.mxu0 0.0
      %911 = vmatpush1.msra.mxu0 0.0
      %912 = vmatprep.subr.mxu0 0.0
      %913 = vmatpush1.msra.mxu0 0.0
      %914 = vmatprep.subr.mxu0 0.0
      %915 = vmatpush1.msra.mxu0 0.0
      %916 = vmatprep.subr.mxu0 0.0
      %917 = vmatpush1.msra.mxu0 0.0
      %918 = vmatprep.subr.mxu0 0.0
      %919 = vmatpush1.msra.mxu0 0.0
      %920 = vmatprep.subr.mxu0 0.0
      %921 = vmatpush1.msra.mxu0 0.0
      %922 = vmatprep.subr.mxu0 0.0
      %923 = vmatpush1.msra.mxu0 0.0
      %924 = vmatprep.subr.mxu0 0.0
      %925 = vmatpush1.msra.mxu0 0.0
      %926 = vmatprep.subr.mxu0 0.0
      %927 = vmatpush1.msra.mxu0 0.0
      %928 = vmatprep.subr.mxu0 0.0
      %929 = vmatpush1.msra.mxu0 0.0
      %930 = vmatprep.subr.mxu0 0.0
      %931 = vmatpush1.msra.mxu0 0.0
      %932 = vmatprep.subr.mxu0 0.0
      %933 = vmatpush1.msra.mxu0 0.0
      %934 = vmatprep.subr.mxu0 0.0
      %935 = vmatpush1.msra.mxu0 0.0
      %936 = vmatprep.subr.mxu0 0.0
      %937 = vmatpush1.msra.mxu0 0.0
      %938 = vmatprep.subr.mxu0 0.0
      %939 = vmatpush1.msra.mxu0 0.0
      %940 = vmatprep.subr.mxu0 0.0
      %941 = vmatpush1.msra.mxu0 0.0
      %942 = vmatprep.subr.mxu0 0.0
      %943 = vmatpush1.msra.mxu0 0.0
      %944 = vmatprep.subr.mxu0 0.0
      %945 = vmatpush1.msra.mxu0 0.0
      %946 = vmatprep.subr.mxu0 0.0
      %947 = vmatpush1.msra.mxu0 0.0
      %948 = vmatprep.subr.mxu0 0.0
      %949 = vmatpush1.msra.mxu0 0.0
      %950 = vmatprep.subr.mxu0 0.0
      %951 = vmatpush1.msra.mxu0 0.0
      %952 = vmatprep.subr.mxu0 0.0
      %953 = vmatpush1.msra.mxu0 0.0
      %954 = vmatprep.subr.mxu0 0.0
      %955 = vmatpush1.msra.mxu0 0.0
      %956 = vmatprep.subr.mxu0 0.0
      %957 = vmatpush1.msra.mxu0 0.0
      %958 = vmatprep.subr.mxu0 0.0
      %959 = vmatpush1.msra.mxu0 0.0
      %960 = vmatprep.subr.mxu0 0.0
      %961 = vmatpush1.msra.mxu0 0.0
      %962 = vmatprep.mubr.f32.mxu0 0.0
      %963 = vmatmul.mubr.f32.gmra.mrb[0].mxu0 %v896
      %v964 = vpop.f32.mrb[0].mxu0
      %v965 = vadd.f32 0.0, %v964
      %v966 = vpop.f32.mrb[0].mxu0
      %v967 = vadd.f32 0.0, %v966
      %968 = vdwg.mxu0
      %969 = vmatprep.subr.mxu0 %v310
      %970 = vmatpush1.msra.mxu0 %v308
      %971 = vmatprep.subr.mxu0 0.0
      %972 = vmatpush1.msra.mxu0 0.0
      %973 = vmatprep.subr.mxu0 0.0
      %974 = vmatpush1.msra.mxu0 0.0
      %975 = vmatprep.subr.mxu0 0.0
      %976 = vmatpush1.msra.mxu0 0.0
      %977 = vmatprep.subr.mxu0 0.0
      %978 = vmatpush1.msra.mxu0 0.0
      %979 = vmatprep.subr.mxu0 0.0
      %980 = vmatpush1.msra.mxu0 0.0
      %981 = vmatprep.subr.mxu0 0.0
      %982 = vmatpush1.msra.mxu0 0.0
      %983 = vmatprep.subr.mxu0 0.0
      %984 = vmatpush1.msra.mxu0 0.0
      %985 = vmatprep.subr.mxu0 0.0
      %986 = vmatpush1.msra.mxu0 0.0
      %987 = vmatprep.subr.mxu0 0.0
      %988 = vmatpush1.msra.mxu0 0.0
      %989 = vmatprep.subr.mxu0 0.0
      %990 = vmatpush1.msra.mxu0 0.0
      %991 = vmatprep.subr.mxu0 0.0
      %992 = vmatpush1.msra.mxu0 0.0
      %993 = vmatprep.subr.mxu0 0.0
      %994 = vmatpush1.msra.mxu0 0.0
      %995 = vmatprep.subr.mxu0 0.0
      %996 = vmatpush1.msra.mxu0 0.0
      %997 = vmatprep.subr.mxu0 0.0
      %998 = vmatpush1.msra.mxu0 0.0
      %999 = vmatprep.subr.mxu0 0.0
      %1000 = vmatpush1.msra.mxu0 0.0
      %1001 = vmatprep.subr.mxu0 0.0
      %1002 = vmatpush1.msra.mxu0 0.0
      %1003 = vmatprep.subr.mxu0 0.0
      %1004 = vmatpush1.msra.mxu0 0.0
      %1005 = vmatprep.subr.mxu0 0.0
      %1006 = vmatpush1.msra.mxu0 0.0
      %1007 = vmatprep.subr.mxu0 0.0
      %1008 = vmatpush1.msra.mxu0 0.0
      %1009 = vmatprep.subr.mxu0 0.0
      %1010 = vmatpush1.msra.mxu0 0.0
      %1011 = vmatprep.subr.mxu0 0.0
      %1012 = vmatpush1.msra.mxu0 0.0
      %1013 = vmatprep.subr.mxu0 0.0
      %1014 = vmatpush1.msra.mxu0 0.0
      %1015 = vmatprep.subr.mxu0 0.0
      %1016 = vmatpush1.msra.mxu0 0.0
      %1017 = vmatprep.subr.mxu0 0.0
      %1018 = vmatpush1.msra.mxu0 0.0
      %1019 = vmatprep.subr.mxu0 0.0
      %1020 = vmatpush1.msra.mxu0 0.0
      %1021 = vmatprep.subr.mxu0 0.0
      %1022 = vmatpush1.msra.mxu0 0.0
      %1023 = vmatprep.subr.mxu0 0.0
      %1024 = vmatpush1.msra.mxu0 0.0
      %1025 = vmatprep.subr.mxu0 0.0
      %1026 = vmatpush1.msra.mxu0 0.0
      %1027 = vmatprep.subr.mxu0 0.0
      %1028 = vmatpush1.msra.mxu0 0.0
      %1029 = vmatprep.subr.mxu0 0.0
      %1030 = vmatpush1.msra.mxu0 0.0
      %1031 = vmatprep.subr.mxu0 0.0
      %1032 = vmatpush1.msra.mxu0 0.0
      %1033 = vmatprep.mubr.f32.mxu0 0.0
      %1034 = vmatmul.mubr.f32.gmra.mrb[0].mxu0 %v896
      %v1035 = vpop.f32.mrb[0].mxu0
      %v1036 = vadd.f32 0.0, %v1035
      %v1037 = vpop.f32.mrb[0].mxu0
      %v1038 = vadd.f32 0.0, %v1037
      %1039 = vdwg.mxu0
      %1040 = vmatprep.subr.mxu0 %v314
      %1041 = vmatpush1.msra.mxu0 %v312
      %1042 = vmatprep.subr.mxu0 0.0
      %1043 = vmatpush1.msra.mxu0 0.0
      %1044 = vmatprep.subr.mxu0 0.0
      %1045 = vmatpush1.msra.mxu0 0.0
      %1046 = vmatprep.subr.mxu0 0.0
      %1047 = vmatpush1.msra.mxu0 0.0
      %1048 = vmatprep.subr.mxu0 0.0
      %1049 = vmatpush1.msra.mxu0 0.0
      %1050 = vmatprep.subr.mxu0 0.0
      %1051 = vmatpush1.msra.mxu0 0.0
      %1052 = vmatprep.subr.mxu0 0.0
      %1053 = vmatpush1.msra.mxu0 0.0
      %1054 = vmatprep.subr.mxu0 0.0
      %1055 = vmatpush1.msra.mxu0 0.0
      %1056 = vmatprep.subr.mxu0 0.0
      %1057 = vmatpush1.msra.mxu0 0.0
      %1058 = vmatprep.subr.mxu0 0.0
      %1059 = vmatpush1.msra.mxu0 0.0
      %1060 = vmatprep.subr.mxu0 0.0
      %1061 = vmatpush1.msra.mxu0 0.0
      %1062 = vmatprep.subr.mxu0 0.0
      %1063 = vmatpush1.msra.mxu0 0.0
      %1064 = vmatprep.subr.mxu0 0.0
      %1065 = vmatpush1.msra.mxu0 0.0
      %1066 = vmatprep.subr.mxu0 0.0
      %1067 = vmatpush1.msra.mxu0 0.0
      %1068 = vmatprep.subr.mxu0 0.0
      %1069 = vmatpush1.msra.mxu0 0.0
      %1070 = vmatprep.subr.mxu0 0.0
      %1071 = vmatpush1.msra.mxu0 0.0
      %1072 = vmatprep.subr.mxu0 0.0
      %1073 = vmatpush1.msra.mxu0 0.0
      %1074 = vmatprep.subr.mxu0 0.0
      %1075 = vmatpush1.msra.mxu0 0.0
      %1076 = vmatprep.subr.mxu0 0.0
      %1077 = vmatpush1.msra.mxu0 0.0
      %1078 = vmatprep.subr.mxu0 0.0
      %1079 = vmatpush1.msra.mxu0 0.0
      %1080 = vmatprep.subr.mxu0 0.0
      %1081 = vmatpush1.msra.mxu0 0.0
      %1082 = vmatprep.subr.mxu0 0.0
      %1083 = vmatpush1.msra.mxu0 0.0
      %1084 = vmatprep.subr.mxu0 0.0
      %1085 = vmatpush1.msra.mxu0 0.0
      %1086 = vmatprep.subr.mxu0 0.0
      %1087 = vmatpush1.msra.mxu0 0.0
      %1088 = vmatprep.subr.mxu0 0.0
      %1089 = vmatpush1.msra.mxu0 0.0
      %1090 = vmatprep.subr.mxu0 0.0
      %1091 = vmatpush1.msra.mxu0 0.0
      %1092 = vmatprep.subr.mxu0 0.0
      %1093 = vmatpush1.msra.mxu0 0.0
      %1094 = vmatprep.subr.mxu0 0.0
      %1095 = vmatpush1.msra.mxu0 0.0
      %1096 = vmatprep.subr.mxu0 0.0
      %1097 = vmatpush1.msra.mxu0 0.0
      %1098 = vmatprep.subr.mxu0 0.0
      %1099 = vmatpush1.msra.mxu0 0.0
      %1100 = vmatprep.subr.mxu0 0.0
      %1101 = vmatpush1.msra.mxu0 0.0
      %1102 = vmatprep.subr.mxu0 0.0
      %1103 = vmatpush1.msra.mxu0 0.0
      %1104 = vmatprep.mubr.f32.mxu0 0.0
      %1105 = vmatmul.mubr.f32.gmra.mrb[0].mxu0 %v896
      %v1106 = vpop.f32.mrb[0].mxu0
      %v1107 = vadd.f32 0.0, %v1106
      %v1108 = vpop.f32.mrb[0].mxu0
      %v1109 = vadd.f32 0.0, %v1108
      %1110 = vdwg.mxu0
      %1111 = vmatprep.subr.mxu0 %v318
      %1112 = vmatpush1.msra.mxu0 %v316
      %1113 = vmatprep.subr.mxu0 0.0
      %1114 = vmatpush1.msra.mxu0 0.0
      %1115 = vmatprep.subr.mxu0 0.0
      %1116 = vmatpush1.msra.mxu0 0.0
      %1117 = vmatprep.subr.mxu0 0.0
      %1118 = vmatpush1.msra.mxu0 0.0
      %1119 = vmatprep.subr.mxu0 0.0
      %1120 = vmatpush1.msra.mxu0 0.0
      %1121 = vmatprep.subr.mxu0 0.0
      %1122 = vmatpush1.msra.mxu0 0.0
      %1123 = vmatprep.subr.mxu0 0.0
      %1124 = vmatpush1.msra.mxu0 0.0
      %1125 = vmatprep.subr.mxu0 0.0
      %1126 = vmatpush1.msra.mxu0 0.0
      %1127 = vmatprep.subr.mxu0 0.0
      %1128 = vmatpush1.msra.mxu0 0.0
      %1129 = vmatprep.subr.mxu0 0.0
      %1130 = vmatpush1.msra.mxu0 0.0
      %1131 = vmatprep.subr.mxu0 0.0
      %1132 = vmatpush1.msra.mxu0 0.0
      %1133 = vmatprep.subr.mxu0 0.0
      %1134 = vmatpush1.msra.mxu0 0.0
      %1135 = vmatprep.subr.mxu0 0.0
      %1136 = vmatpush1.msra.mxu0 0.0
      %1137 = vmatprep.subr.mxu0 0.0
      %1138 = vmatpush1.msra.mxu0 0.0
      %1139 = vmatprep.subr.mxu0 0.0
      %1140 = vmatpush1.msra.mxu0 0.0
      %1141 = vmatprep.subr.mxu0 0.0
      %1142 = vmatpush1.msra.mxu0 0.0
      %1143 = vmatprep.subr.mxu0 0.0
      %1144 = vmatpush1.msra.mxu0 0.0
      %1145 = vmatprep.subr.mxu0 0.0
      %1146 = vmatpush1.msra.mxu0 0.0
      %1147 = vmatprep.subr.mxu0 0.0
      %1148 = vmatpush1.msra.mxu0 0.0
      %1149 = vmatprep.subr.mxu0 0.0
      %1150 = vmatpush1.msra.mxu0 0.0
      %1151 = vmatprep.subr.mxu0 0.0
      %1152 = vmatpush1.msra.mxu0 0.0
      %1153 = vmatprep.subr.mxu0 0.0
      %1154 = vmatpush1.msra.mxu0 0.0
      %1155 = vmatprep.subr.mxu0 0.0
      %1156 = vmatpush1.msra.mxu0 0.0
      %1157 = vmatprep.subr.mxu0 0.0
      %1158 = vmatpush1.msra.mxu0 0.0
      %1159 = vmatprep.subr.mxu0 0.0
      %1160 = vmatpush1.msra.mxu0 0.0
      %1161 = vmatprep.subr.mxu0 0.0
      %1162 = vmatpush1.msra.mxu0 0.0
      %1163 = vmatprep.subr.mxu0 0.0
      %1164 = vmatpush1.msra.mxu0 0.0
      %1165 = vmatprep.subr.mxu0 0.0
      %1166 = vmatpush1.msra.mxu0 0.0
      %1167 = vmatprep.subr.mxu0 0.0
      %1168 = vmatpush1.msra.mxu0 0.0
      %1169 = vmatprep.subr.mxu0 0.0
      %1170 = vmatpush1.msra.mxu0 0.0
      %1171 = vmatprep.subr.mxu0 0.0
      %1172 = vmatpush1.msra.mxu0 0.0
      %1173 = vmatprep.subr.mxu0 0.0
      %1174 = vmatpush1.msra.mxu0 0.0
      %1175 = vmatprep.mubr.f32.mxu0 0.0
      %1176 = vmatmul.mubr.f32.gmra.mrb[0].mxu0 %v896
      %v1177 = vpop.f32.mrb[0].mxu0
      %v1178 = vadd.f32 0.0, %v1177
      %v1179 = vpop.f32.mrb[0].mxu0
      %v1180 = vadd.f32 0.0, %v1179
      %1181 = vdwg.mxu0
      %s1182 = scalar_lea.vmem %s1, 24
      %v1183 = vld [vmem:[%s1182] sm:$0xff]
      %v1185 = vsel %vm299, %v1183, 0
      %1187 = vmatprep.subr.mxu0 %v306
      %1188 = vmatpush1.msra.mxu0 %v304
      %1189 = vmatprep.subr.mxu0 0.0
      %1190 = vmatpush1.msra.mxu0 0.0
      %1191 = vmatprep.subr.mxu0 0.0
      %1192 = vmatpush1.msra.mxu0 0.0
      %1193 = vmatprep.subr.mxu0 0.0
      %1194 = vmatpush1.msra.mxu0 0.0
      %1195 = vmatprep.subr.mxu0 0.0
      %1196 = vmatpush1.msra.mxu0 0.0
      %1197 = vmatprep.subr.mxu0 0.0
      %1198 = vmatpush1.msra.mxu0 0.0
      %1199 = vmatprep.subr.mxu0 0.0
      %1200 = vmatpush1.msra.mxu0 0.0
      %1201 = vmatprep.subr.mxu0 0.0
      %1202 = vmatpush1.msra.mxu0 0.0
      %1203 = vmatprep.subr.mxu0 0.0
      %1204 = vmatpush1.msra.mxu0 0.0
      %1205 = vmatprep.subr.mxu0 0.0
      %1206 = vmatpush1.msra.mxu0 0.0
      %1207 = vmatprep.subr.mxu0 0.0
      %1208 = vmatpush1.msra.mxu0 0.0
      %1209 = vmatprep.subr.mxu0 0.0
      %1210 = vmatpush1.msra.mxu0 0.0
      %1211 = vmatprep.subr.mxu0 0.0
      %1212 = vmatpush1.msra.mxu0 0.0
      %1213 = vmatprep.subr.mxu0 0.0
      %1214 = vmatpush1.msra.mxu0 0.0
      %1215 = vmatprep.subr.mxu0 0.0
      %1216 = vmatpush1.msra.mxu0 0.0
      %1217 = vmatprep.subr.mxu0 0.0
      %1218 = vmatpush1.msra.mxu0 0.0
      %1219 = vmatprep.subr.mxu0 0.0
      %1220 = vmatpush1.msra.mxu0 0.0
      %1221 = vmatprep.subr.mxu0 0.0
      %1222 = vmatpush1.msra.mxu0 0.0
      %1223 = vmatprep.subr.mxu0 0.0
      %1224 = vmatpush1.msra.mxu0 0.0
      %1225 = vmatprep.subr.mxu0 0.0
      %1226 = vmatpush1.msra.mxu0 0.0
      %1227 = vmatprep.subr.mxu0 0.0
      %1228 = vmatpush1.msra.mxu0 0.0
      %1229 = vmatprep.subr.mxu0 0.0
      %1230 = vmatpush1.msra.mxu0 0.0
      %1231 = vmatprep.subr.mxu0 0.0
      %1232 = vmatpush1.msra.mxu0 0.0
      %1233 = vmatprep.subr.mxu0 0.0
      %1234 = vmatpush1.msra.mxu0 0.0
      %1235 = vmatprep.subr.mxu0 0.0
      %1236 = vmatpush1.msra.mxu0 0.0
      %1237 = vmatprep.subr.mxu0 0.0
      %1238 = vmatpush1.msra.mxu0 0.0
      %1239 = vmatprep.subr.mxu0 0.0
      %1240 = vmatpush1.msra.mxu0 0.0
      %1241 = vmatprep.subr.mxu0 0.0
      %1242 = vmatpush1.msra.mxu0 0.0
      %1243 = vmatprep.subr.mxu0 0.0
      %1244 = vmatpush1.msra.mxu0 0.0
      %1245 = vmatprep.subr.mxu0 0.0
      %1246 = vmatpush1.msra.mxu0 0.0
      %1247 = vmatprep.subr.mxu0 0.0
      %1248 = vmatpush1.msra.mxu0 0.0
      %1249 = vmatprep.subr.mxu0 0.0
      %1250 = vmatpush1.msra.mxu0 0.0
      %1251 = vmatprep.mubr.f32.mxu0 0.0
      %1252 = vmatmul.mubr.f32.gmra.mrb[0].mxu0 %v1185
      %v1253 = vpop.f32.mrb[0].mxu0
      %v1254 = vadd.f32 0.0, %v1253
      %v1255 = vpop.f32.mrb[0].mxu0
      %v1256 = vadd.f32 0.0, %v1255
      %1257 = vdwg.mxu0
      %1258 = vmatprep.subr.mxu0 %v310
      %1259 = vmatpush1.msra.mxu0 %v308
      %1260 = vmatprep.subr.mxu0 0.0
      %1261 = vmatpush1.msra.mxu0 0.0
      %1262 = vmatprep.subr.mxu0 0.0
      %1263 = vmatpush1.msra.mxu0 0.0
      %1264 = vmatprep.subr.mxu0 0.0
      %1265 = vmatpush1.msra.mxu0 0.0
      %1266 = vmatprep.subr.mxu0 0.0
      %1267 = vmatpush1.msra.mxu0 0.0
      %1268 = vmatprep.subr.mxu0 0.0
      %1269 = vmatpush1.msra.mxu0 0.0
      %1270 = vmatprep.subr.mxu0 0.0
      %1271 = vmatpush1.msra.mxu0 0.0
      %1272 = vmatprep.subr.mxu0 0.0
      %1273 = vmatpush1.msra.mxu0 0.0
      %1274 = vmatprep.subr.mxu0 0.0
      %1275 = vmatpush1.msra.mxu0 0.0
      %1276 = vmatprep.subr.mxu0 0.0
      %1277 = vmatpush1.msra.mxu0 0.0
      %1278 = vmatprep.subr.mxu0 0.0
      %1279 = vmatpush1.msra.mxu0 0.0
      %1280 = vmatprep.subr.mxu0 0.0
      %1281 = vmatpush1.msra.mxu0 0.0
      %1282 = vmatprep.subr.mxu0 0.0
      %1283 = vmatpush1.msra.mxu0 0.0
      %1284 = vmatprep.subr.mxu0 0.0
      %1285 = vmatpush1.msra.mxu0 0.0
      %1286 = vmatprep.subr.mxu0 0.0
      %1287 = vmatpush1.msra.mxu0 0.0
      %1288 = vmatprep.subr.mxu0 0.0
      %1289 = vmatpush1.msra.mxu0 0.0
      %1290 = vmatprep.subr.mxu0 0.0
      %1291 = vmatpush1.msra.mxu0 0.0
      %1292 = vmatprep.subr.mxu0 0.0
      %1293 = vmatpush1.msra.mxu0 0.0
      %1294 = vmatprep.subr.mxu0 0.0
      %1295 = vmatpush1.msra.mxu0 0.0
      %1296 = vmatprep.subr.mxu0 0.0
      %1297 = vmatpush1.msra.mxu0 0.0
      %1298 = vmatprep.subr.mxu0 0.0
      %1299 = vmatpush1.msra.mxu0 0.0
      %1300 = vmatprep.subr.mxu0 0.0
      %1301 = vmatpush1.msra.mxu0 0.0
      %1302 = vmatprep.subr.mxu0 0.0
      %1303 = vmatpush1.msra.mxu0 0.0
      %1304 = vmatprep.subr.mxu0 0.0
      %1305 = vmatpush1.msra.mxu0 0.0
      %1306 = vmatprep.subr.mxu0 0.0
      %1307 = vmatpush1.msra.mxu0 0.0
      %1308 = vmatprep.subr.mxu0 0.0
      %1309 = vmatpush1.msra.mxu0 0.0
      %1310 = vmatprep.subr.mxu0 0.0
      %1311 = vmatpush1.msra.mxu0 0.0
      %1312 = vmatprep.subr.mxu0 0.0
      %1313 = vmatpush1.msra.mxu0 0.0
      %1314 = vmatprep.subr.mxu0 0.0
      %1315 = vmatpush1.msra.mxu0 0.0
      %1316 = vmatprep.subr.mxu0 0.0
      %1317 = vmatpush1.msra.mxu0 0.0
      %1318 = vmatprep.subr.mxu0 0.0
      %1319 = vmatpush1.msra.mxu0 0.0
      %1320 = vmatprep.subr.mxu0 0.0
      %1321 = vmatpush1.msra.mxu0 0.0
      %1322 = vmatprep.mubr.f32.mxu0 0.0
      %1323 = vmatmul.mubr.f32.gmra.mrb[0].mxu0 %v1185
      %v1324 = vpop.f32.mrb[0].mxu0
      %v1325 = vadd.f32 0.0, %v1324
      %v1326 = vpop.f32.mrb[0].mxu0
      %v1327 = vadd.f32 0.0, %v1326
      %1328 = vdwg.mxu0
      %1329 = vmatprep.subr.mxu0 %v314
      %1330 = vmatpush1.msra.mxu0 %v312
      %1331 = vmatprep.subr.mxu0 0.0
      %1332 = vmatpush1.msra.mxu0 0.0
      %1333 = vmatprep.subr.mxu0 0.0
      %1334 = vmatpush1.msra.mxu0 0.0
      %1335 = vmatprep.subr.mxu0 0.0
      %1336 = vmatpush1.msra.mxu0 0.0
      %1337 = vmatprep.subr.mxu0 0.0
      %1338 = vmatpush1.msra.mxu0 0.0
      %1339 = vmatprep.subr.mxu0 0.0
      %1340 = vmatpush1.msra.mxu0 0.0
      %1341 = vmatprep.subr.mxu0 0.0
      %1342 = vmatpush1.msra.mxu0 0.0
      %1343 = vmatprep.subr.mxu0 0.0
      %1344 = vmatpush1.msra.mxu0 0.0
      %1345 = vmatprep.subr.mxu0 0.0
      %1346 = vmatpush1.msra.mxu0 0.0
      %1347 = vmatprep.subr.mxu0 0.0
      %1348 = vmatpush1.msra.mxu0 0.0
      %1349 = vmatprep.subr.mxu0 0.0
      %1350 = vmatpush1.msra.mxu0 0.0
      %1351 = vmatprep.subr.mxu0 0.0
      %1352 = vmatpush1.msra.mxu0 0.0
      %1353 = vmatprep.subr.mxu0 0.0
      %1354 = vmatpush1.msra.mxu0 0.0
      %1355 = vmatprep.subr.mxu0 0.0
      %1356 = vmatpush1.msra.mxu0 0.0
      %1357 = vmatprep.subr.mxu0 0.0
      %1358 = vmatpush1.msra.mxu0 0.0
      %1359 = vmatprep.subr.mxu0 0.0
      %1360 = vmatpush1.msra.mxu0 0.0
      %1361 = vmatprep.subr.mxu0 0.0
      %1362 = vmatpush1.msra.mxu0 0.0
      %1363 = vmatprep.subr.mxu0 0.0
      %1364 = vmatpush1.msra.mxu0 0.0
      %1365 = vmatprep.subr.mxu0 0.0
      %1366 = vmatpush1.msra.mxu0 0.0
      %1367 = vmatprep.subr.mxu0 0.0
      %1368 = vmatpush1.msra.mxu0 0.0
      %1369 = vmatprep.subr.mxu0 0.0
      %1370 = vmatpush1.msra.mxu0 0.0
      %1371 = vmatprep.subr.mxu0 0.0
      %1372 = vmatpush1.msra.mxu0 0.0
      %1373 = vmatprep.subr.mxu0 0.0
      %1374 = vmatpush1.msra.mxu0 0.0
      %1375 = vmatprep.subr.mxu0 0.0
      %1376 = vmatpush1.msra.mxu0 0.0
      %1377 = vmatprep.subr.mxu0 0.0
      %1378 = vmatpush1.msra.mxu0 0.0
      %1379 = vmatprep.subr.mxu0 0.0
      %1380 = vmatpush1.msra.mxu0 0.0
      %1381 = vmatprep.subr.mxu0 0.0
      %1382 = vmatpush1.msra.mxu0 0.0
      %1383 = vmatprep.subr.mxu0 0.0
      %1384 = vmatpush1.msra.mxu0 0.0
      %1385 = vmatprep.subr.mxu0 0.0
      %1386 = vmatpush1.msra.mxu0 0.0
      %1387 = vmatprep.subr.mxu0 0.0
      %1388 = vmatpush1.msra.mxu0 0.0
      %1389 = vmatprep.subr.mxu0 0.0
      %1390 = vmatpush1.msra.mxu0 0.0
      %1391 = vmatprep.subr.mxu0 0.0
      %1392 = vmatpush1.msra.mxu0 0.0
      %1393 = vmatprep.mubr.f32.mxu0 0.0
      %1394 = vmatmul.mubr.f32.gmra.mrb[0].mxu0 %v1185
      %v1395 = vpop.f32.mrb[0].mxu0
      %v1396 = vadd.f32 0.0, %v1395
      %v1397 = vpop.f32.mrb[0].mxu0
      %v1398 = vadd.f32 0.0, %v1397
      %1399 = vdwg.mxu0
      %1400 = vmatprep.subr.mxu0 %v318
      %1401 = vmatpush1.msra.mxu0 %v316
      %1402 = vmatprep.subr.mxu0 0.0
      %1403 = vmatpush1.msra.mxu0 0.0
      %1404 = vmatprep.subr.mxu0 0.0
      %1405 = vmatpush1.msra.mxu0 0.0
      %1406 = vmatprep.subr.mxu0 0.0
      %1407 = vmatpush1.msra.mxu0 0.0
      %1408 = vmatprep.subr.mxu0 0.0
      %1409 = vmatpush1.msra.mxu0 0.0
      %1410 = vmatprep.subr.mxu0 0.0
      %1411 = vmatpush1.msra.mxu0 0.0
      %1412 = vmatprep.subr.mxu0 0.0
      %1413 = vmatpush1.msra.mxu0 0.0
      %1414 = vmatprep.subr.mxu0 0.0
      %1415 = vmatpush1.msra.mxu0 0.0
      %1416 = vmatprep.subr.mxu0 0.0
      %1417 = vmatpush1.msra.mxu0 0.0
      %1418 = vmatprep.subr.mxu0 0.0
      %1419 = vmatpush1.msra.mxu0 0.0
      %1420 = vmatprep.subr.mxu0 0.0
      %1421 = vmatpush1.msra.mxu0 0.0
      %1422 = vmatprep.subr.mxu0 0.0
      %1423 = vmatpush1.msra.mxu0 0.0
      %1424 = vmatprep.subr.mxu0 0.0
      %1425 = vmatpush1.msra.mxu0 0.0
      %1426 = vmatprep.subr.mxu0 0.0
      %1427 = vmatpush1.msra.mxu0 0.0
      %1428 = vmatprep.subr.mxu0 0.0
      %1429 = vmatpush1.msra.mxu0 0.0
      %1430 = vmatprep.subr.mxu0 0.0
      %1431 = vmatpush1.msra.mxu0 0.0
      %1432 = vmatprep.subr.mxu0 0.0
      %1433 = vmatpush1.msra.mxu0 0.0
      %1434 = vmatprep.subr.mxu0 0.0
      %1435 = vmatpush1.msra.mxu0 0.0
      %1436 = vmatprep.subr.mxu0 0.0
      %1437 = vmatpush1.msra.mxu0 0.0
      %1438 = vmatprep.subr.mxu0 0.0
      %1439 = vmatpush1.msra.mxu0 0.0
      %1440 = vmatprep.subr.mxu0 0.0
      %1441 = vmatpush1.msra.mxu0 0.0
      %1442 = vmatprep.subr.mxu0 0.0
      %1443 = vmatpush1.msra.mxu0 0.0
      %1444 = vmatprep.subr.mxu0 0.0
      %1445 = vmatpush1.msra.mxu0 0.0
      %1446 = vmatprep.subr.mxu0 0.0
      %1447 = vmatpush1.msra.mxu0 0.0
      %1448 = vmatprep.subr.mxu0 0.0
      %1449 = vmatpush1.msra.mxu0 0.0
      %1450 = vmatprep.subr.mxu0 0.0
      %1451 = vmatpush1.msra.mxu0 0.0
      %1452 = vmatprep.subr.mxu0 0.0
      %1453 = vmatpush1.msra.mxu0 0.0
      %1454 = vmatprep.subr.mxu0 0.0
      %1455 = vmatpush1.msra.mxu0 0.0
      %1456 = vmatprep.subr.mxu0 0.0
      %1457 = vmatpush1.msra.mxu0 0.0
      %1458 = vmatprep.subr.mxu0 0.0
      %1459 = vmatpush1.msra.mxu0 0.0
      %1460 = vmatprep.subr.mxu0 0.0
      %1461 = vmatpush1.msra.mxu0 0.0
      %1462 = vmatprep.subr.mxu0 0.0
      %1463 = vmatpush1.msra.mxu0 0.0
      %1464 = vmatprep.mubr.f32.mxu0 0.0
      %1465 = vmatmul.mubr.f32.gmra.mrb[0].mxu0 %v1185
      %v1466 = vpop.f32.mrb[0].mxu0
      %v1467 = vadd.f32 0.0, %v1466
      %v1468 = vpop.f32.mrb[0].mxu0
      %v1469 = vadd.f32 0.0, %v1468
      %1470 = vdwg.mxu0
      %vm1471 = vcmp.eq.s32.totalorder %v287, 0
      %vm1472 = vcmp.eq.s32.totalorder %v287, 1
      %vm1473 = vcmp.eq.s32.totalorder %v287, 2
      %v1474 = vsel %vm1473, 1, 0
      %v1475 = vlaneseq
      %v1476 = vshrl.u32 %v1475, 7
      %v1477 = vsub.s32 0, %v1476
      %v1478 = vrot.slane %v1474, %v1477
      %v1479 = vlaneseq
      %v1480 = vshrl.u32 %v1479, 7
      %v1481 = vsub.s32 1, %v1480
      %v1482 = vrot.slane %v1474, %v1481
      %v1483 = vlaneseq
      %v1484 = vshrl.u32 %v1483, 7
      %v1485 = vsub.s32 2, %v1484
      %v1486 = vrot.slane %v1474, %v1485
      %v1487 = vlaneseq
      %v1488 = vshrl.u32 %v1487, 7
      %v1489 = vsub.s32 3, %v1488
      %v1490 = vrot.slane %v1474, %v1489
      %v1491 = vlaneseq
      %v1492 = vshrl.u32 %v1491, 7
      %v1493 = vsub.s32 4, %v1492
      %v1494 = vrot.slane %v1474, %v1493
      %v1495 = vlaneseq
      %v1496 = vshrl.u32 %v1495, 7
      %v1497 = vsub.s32 5, %v1496
      %v1498 = vrot.slane %v1474, %v1497
      %v1499 = vlaneseq
      %v1500 = vshrl.u32 %v1499, 7
      %v1501 = vsub.s32 6, %v1500
      %v1502 = vrot.slane %v1474, %v1501
      %v1503 = vlaneseq
      %v1504 = vshrl.u32 %v1503, 7
      %v1505 = vsub.s32 7, %v1504
      %v1506 = vrot.slane %v1474, %v1505
      %vm1507 = vcmp.eq.s32.totalorder %v1478, 1
      %vm1508 = vcmp.eq.s32.totalorder %v1482, 1
      %vm1509 = vcmp.eq.s32.totalorder %v1486, 1
      %vm1510 = vcmp.eq.s32.totalorder %v1490, 1
      %vm1511 = vcmp.eq.s32.totalorder %v1494, 1
      %vm1512 = vcmp.eq.s32.totalorder %v1498, 1
      %vm1513 = vcmp.eq.s32.totalorder %v1502, 1
      %vm1514 = vcmp.eq.s32.totalorder %v1506, 1
      %v1515 = vsel %vm1507, %v965, %v1254
      %v1516 = vsel %vm1508, %v967, %v1256
      %v1517 = vsel %vm1509, %v1036, %v1325
      %v1518 = vsel %vm1510, %v1038, %v1327
      %v1519 = vsel %vm1511, %v1107, %v1396
      %v1520 = vsel %vm1512, %v1109, %v1398
      %v1521 = vsel %vm1513, %v1178, %v1467
      %v1522 = vsel %vm1514, %v1180, %v1469
      %v1523 = vsel %vm1472, 1, 0
      %v1524 = vlaneseq
      %v1525 = vshrl.u32 %v1524, 7
      %v1526 = vsub.s32 0, %v1525
      %v1527 = vrot.slane %v1523, %v1526
      %v1528 = vlaneseq
      %v1529 = vshrl.u32 %v1528, 7
      %v1530 = vsub.s32 1, %v1529
      %v1531 = vrot.slane %v1523, %v1530
      %v1532 = vlaneseq
      %v1533 = vshrl.u32 %v1532, 7
      %v1534 = vsub.s32 2, %v1533
      %v1535 = vrot.slane %v1523, %v1534
      %v1536 = vlaneseq
      %v1537 = vshrl.u32 %v1536, 7
      %v1538 = vsub.s32 3, %v1537
      %v1539 = vrot.slane %v1523, %v1538
      %v1540 = vlaneseq
      %v1541 = vshrl.u32 %v1540, 7
      %v1542 = vsub.s32 4, %v1541
      %v1543 = vrot.slane %v1523, %v1542
      %v1544 = vlaneseq
      %v1545 = vshrl.u32 %v1544, 7
      %v1546 = vsub.s32 5, %v1545
      %v1547 = vrot.slane %v1523, %v1546
      %v1548 = vlaneseq
      %v1549 = vshrl.u32 %v1548, 7
      %v1550 = vsub.s32 6, %v1549
      %v1551 = vrot.slane %v1523, %v1550
      %v1552 = vlaneseq
      %v1553 = vshrl.u32 %v1552, 7
      %v1554 = vsub.s32 7, %v1553
      %v1555 = vrot.slane %v1523, %v1554
      %vm1556 = vcmp.eq.s32.totalorder %v1527, 1
      %vm1557 = vcmp.eq.s32.totalorder %v1531, 1
      %vm1558 = vcmp.eq.s32.totalorder %v1535, 1
      %vm1559 = vcmp.eq.s32.totalorder %v1539, 1
      %vm1560 = vcmp.eq.s32.totalorder %v1543, 1
      %vm1561 = vcmp.eq.s32.totalorder %v1547, 1
      %vm1562 = vcmp.eq.s32.totalorder %v1551, 1
      %vm1563 = vcmp.eq.s32.totalorder %v1555, 1
      %v1564 = vsel %vm1556, %v676, %v1515
      %v1565 = vsel %vm1557, %v678, %v1516
      %v1566 = vsel %vm1558, %v747, %v1517
      %v1567 = vsel %vm1559, %v749, %v1518
      %v1568 = vsel %vm1560, %v818, %v1519
      %v1569 = vsel %vm1561, %v820, %v1520
      %v1570 = vsel %vm1562, %v889, %v1521
      %v1571 = vsel %vm1563, %v891, %v1522
      %v1572 = vsel %vm1471, 1, 0
      %v1573 = vlaneseq
      %v1574 = vshrl.u32 %v1573, 7
      %v1575 = vsub.s32 0, %v1574
      %v1576 = vrot.slane %v1572, %v1575
      %v1577 = vlaneseq
      %v1578 = vshrl.u32 %v1577, 7
      %v1579 = vsub.s32 1, %v1578
      %v1580 = vrot.slane %v1572, %v1579
      %v1581 = vlaneseq
      %v1582 = vshrl.u32 %v1581, 7
      %v1583 = vsub.s32 2, %v1582
      %v1584 = vrot.slane %v1572, %v1583
      %v1585 = vlaneseq
      %v1586 = vshrl.u32 %v1585, 7
      %v1587 = vsub.s32 3, %v1586
      %v1588 = vrot.slane %v1572, %v1587
      %v1589 = vlaneseq
      %v1590 = vshrl.u32 %v1589, 7
      %v1591 = vsub.s32 4, %v1590
      %v1592 = vrot.slane %v1572, %v1591
      %v1593 = vlaneseq
      %v1594 = vshrl.u32 %v1593, 7
      %v1595 = vsub.s32 5, %v1594
      %v1596 = vrot.slane %v1572, %v1595
      %v1597 = vlaneseq
      %v1598 = vshrl.u32 %v1597, 7
      %v1599 = vsub.s32 6, %v1598
      %v1600 = vrot.slane %v1572, %v1599
      %v1601 = vlaneseq
      %v1602 = vshrl.u32 %v1601, 7
      %v1603 = vsub.s32 7, %v1602
      %v1604 = vrot.slane %v1572, %v1603
      %vm1605 = vcmp.eq.s32.totalorder %v1576, 1
      %vm1606 = vcmp.eq.s32.totalorder %v1580, 1
      %vm1607 = vcmp.eq.s32.totalorder %v1584, 1
      %vm1608 = vcmp.eq.s32.totalorder %v1588, 1
      %vm1609 = vcmp.eq.s32.totalorder %v1592, 1
      %vm1610 = vcmp.eq.s32.totalorder %v1596, 1
      %vm1611 = vcmp.eq.s32.totalorder %v1600, 1
      %vm1612 = vcmp.eq.s32.totalorder %v1604, 1
      %v1613 = vsel %vm1605, %v387, %v1564
      %v1614 = vsel %vm1606, %v389, %v1565
      %v1615 = vsel %vm1607, %v458, %v1566
      %v1616 = vsel %vm1608, %v460, %v1567
      %v1617 = vsel %vm1609, %v529, %v1568
      %v1618 = vsel %vm1610, %v531, %v1569
      %v1619 = vsel %vm1611, %v600, %v1570
      %v1620 = vsel %vm1612, %v602, %v1571
      %1622 = vset.pattern.permute.xlu0 0
      %1623 = vperm.xlu0 %1622, %v288
      %v1624 = vpop.permute.xlu0 %1623
      %v1626 = vmul.f32 %v1613, %v1624
      %v1627 = vmul.f32 %v1614, %v1624
      %v1628 = vmul.f32 %v1615, %v1624
      %v1629 = vmul.f32 %v1616, %v1624
      %v1630 = vmul.f32 %v1617, %v1624
      %v1631 = vmul.f32 %v1618, %v1624
      %v1632 = vmul.f32 %v1619, %v1624
      %v1633 = vmul.f32 %v1620, %v1624
      %1635 = vset.pattern.permute.xlu0 0
      %1636 = vperm.xlu0 %1635, %v289
      %v1637 = vpop.permute.xlu0 %1636
      %v1639 = vadd.f32 %v1626, %v1637
      %v1640 = vadd.f32 %v1627, %v1637
      %v1641 = vadd.f32 %v1628, %v1637
      %v1642 = vadd.f32 %v1629, %v1637
      %v1643 = vadd.f32 %v1630, %v1637
      %v1644 = vadd.f32 %v1631, %v1637
      %v1645 = vadd.f32 %v1632, %v1637
      %v1646 = vadd.f32 %v1633, %v1637
      %v1647 = vmax.f32 %v1639, 0.0
      %v1648 = vmax.f32 %v1640, 0.0
      %v1649 = vmax.f32 %v1641, 0.0
      %v1650 = vmax.f32 %v1642, 0.0
      %v1651 = vmax.f32 %v1643, 0.0
      %v1652 = vmax.f32 %v1644, 0.0
      %v1653 = vmax.f32 %v1645, 0.0
      %v1654 = vmax.f32 %v1646, 0.0
      %1655 = vst [vmem:[%s281] sm:$0xff] %v1647
      %1656 = vst [vmem:[%s281 + $0x8] sm:$0xff] %v1648
      %1657 = vst [vmem:[%s281 + $0x10] sm:$0xff] %v1649
      %1658 = vst [vmem:[%s281 + $0x18] sm:$0xff] %v1650
      %1659 = vst [vmem:[%s281 + $0x20] sm:$0xff] %v1651
      %1660 = vst [vmem:[%s281 + $0x28] sm:$0xff] %v1652
      %1661 = vst [vmem:[%s281 + $0x30] sm:$0xff] %v1653
      %1662 = vst [vmem:[%s281 + $0x38] sm:$0xff] %v1654
      %s1663 = smul.u32 8, %s21
      %p1664 = scmp.lt.s32.totalorder %s20, 1
      %s1665 = scalar_select %p1664, %s20, 1
      %p1666 = scmp.lt.s32.totalorder %s1663, 7
      %s1667 = scalar_select %p1666, %s1663, 7
      %s1668 = smul.addr %s1665, 8
      %s1669 = sadd.s32 %s1667, %s1668
      %s1670 = smul.addr %s1669, 8
      %s1671 = scalar_lea.vmem %s5, %s1670
      // Predicated region
      $region41: #{trans_conv_bn_relu.1} parent=39 // pred_check
        %p1672 = pneg %p165
      $region42: #{trans_conv_bn_relu.1} parent=39 // pred_check_branch
        %1674 = sbr.rel (%p1672) target = $region44
      $region43: #{trans_conv_bn_relu.1} parent=39 // pred_region
        %s1675 = smul.u32 8, %s21
      $region44: #{trans_conv_bn_relu.1} parent=39 // pred_fallthru
        _
    $region40: #{trans_conv_bn_relu.1} parent=5 // pred_fallthru
      _
    %p1676 = scmp.le.s32.totalorder 2, %s11
    // Predicated region
    $region45: #{trans_conv_bn_relu.1} parent=5 // pred_check
      %p1677 = pneg %p1676
    $region46: #{trans_conv_bn_relu.1} parent=5 // pred_check_branch
      %1679 = sbr.rel (%p1677) target = $region48
    $region47: #{trans_conv_bn_relu.1} parent=5 // pred_region
      %s1680 = ssub.s32 %s11, 2
      // Predicated region
      $region49: #{trans_conv_bn_relu.1} parent=47 // pred_check
        %p1681 = pneg %p171
      $region50: #{trans_conv_bn_relu.1} parent=47 // pred_check_branch
        %1683 = sbr.rel (%p1681) target = $region52
      $region51: #{trans_conv_bn_relu.1} parent=47 // pred_region
        %s1684 = smul.u32 8, %s23
        %p1685 = scmp.lt.s32.totalorder %s22, 1
        %s1686 = scalar_select %p1685, %s22, 1
        %p1687 = scmp.lt.s32.totalorder %s1684, 7
        %s1688 = scalar_select %p1687, %s1684, 7
        %s1689 = smul.addr %s1686, 8
        %s1690 = sadd.s32 %s1688, %s1689
        %s1691 = smul.addr %s1690, 8
        %s1692 = scalar_lea.vmem %s5, %s1691
      $region52: #{trans_conv_bn_relu.1} parent=47 // pred_fallthru
        _
    $region48: #{trans_conv_bn_relu.1} parent=5 // pred_fallthru
      _
  $region6: #{trans_conv_bn_relu.1} parent=0 // loop_footer
    %s15 = sadd.s32 1, %s11
  $region7: #{trans_conv_bn_relu.1} parent=0 // loop_footer_branch
    %10 = sbr.rel target = $region3
  $region8: #{trans_conv_bn_relu.1} parent=0 // loop_exit
    _

</llo_original>
